<compile_context>
chip_gen: v7x
topology: tpu7x:2x2x1
jax: 0.10.0
libtpu: 0.0.40
codegen_flags: <defaults>
</compile_context>

<pallas_src>
import functools

import numpy as np

import jax
import jax.numpy as jnp
from jax.experimental import pallas as pl
from jax.experimental.pallas import tpu as pltpu

BN_EPS = 1e-5
NORM_EPS = 1e-12       # F.normalize eps
GHID = 512             # g-head hidden width (fixed by the module)
LANE = 128             # TPU lane width


def _l2_normalize(x):
    # x / max(||x||, eps)  ==  x * rsqrt(max(||x||^2, eps^2))
    sumsq = jnp.sum(x * x, axis=-1, keepdims=True)
    return x * jax.lax.rsqrt(jnp.maximum(sumsq, NORM_EPS * NORM_EPS))


def cohiclust_kernel(
    x_ref,                   # [tile_b, inp_dim] bf16
    w0_ref, b0_ref,          # f.inp_layer Linear (bf16 W, f32 b)
    w1_ref, b1_ref,          # f.main_block Linear (BN0 folded in)
    wbig_ref, bbig_ref,      # composed feature+heads:  [d1, PACK + 512 + PACK]
    gw2_ref, gb2_ref,        # g-head second Linear, real cols at packed offset
    packed_ref,              # [tile_b, PACK] f32 packed output slab
    *, pack, off_tree, tree_dim,
):
    # ---- f(x): VanillaMLP (eval-mode BNs folded into the following Linears) ----
    r0 = jnp.maximum(
        jnp.dot(x_ref[...], w0_ref[...], preferred_element_type=jnp.float32)
        + b0_ref[...], 0.0)
    r1 = jnp.maximum(
        jnp.dot(r0.astype(jnp.bfloat16), w1_ref[...],
                preferred_element_type=jnp.float32) + b1_ref[...], 0.0)

    # ---- one fused matmul: feature | g-head pre-act | tree pre-act ----
    fused = jnp.dot(r1.astype(jnp.bfloat16), wbig_ref[...],
                    preferred_element_type=jnp.float32) + bbig_ref[...]
    feature = fused[:, :pack]                       # real cols 0:out_dim, 0 elsewhere
    z = jnp.maximum(fused[:, pack:pack + GHID], 0.0)
    t = fused[:, pack + GHID:]                      # real tree cols at off_tree:...

    out = jnp.dot(z.astype(jnp.bfloat16), gw2_ref[...],
                  preferred_element_type=jnp.float32) + gb2_ref[...]
    # (real cols at off_out:off_out+proj_dim, exact zeros elsewhere)

    # sigmoid only on the real tree lanes; padded lanes forced to exact 0 so
    # the packed add does not contaminate the feature/out lanes.
    lane = jax.lax.broadcasted_iota(jnp.int32, t.shape, 1)
    tree = jnp.where((lane >= off_tree) & (lane < off_tree + tree_dim),
                     jax.nn.sigmoid(t), 0.0)

    # disjoint lane ranges with exact zeros elsewhere -> a single add packs them
    packed_ref[...] = _l2_normalize(feature) + _l2_normalize(out) + tree


def _place(a, rows, cols, col_off=0):
    """Zero-pad `a` to [rows, cols] with its columns starting at `col_off`."""
    r, c = a.shape
    return jnp.pad(a, ((0, rows - r), (col_off, cols - c - col_off)))


def prepare_params(p):
    """Fold eval-mode BNs, compose feature->heads, pack output lanes, cast to bf16."""
    d0 = p["w0"].shape[1]
    d1 = p["w1"].shape[1]
    out_dim = p["wo"].shape[1]
    proj_dim = p["gw2"].shape[1]
    tree_dim = p["tw"].shape[1]

    total = out_dim + proj_dim + tree_dim
    PACK = LANE * pl.cdiv(total, LANE)        # packed output width (lane-dense)
    off_feat, off_out, off_tree = 0, out_dim, out_dim + proj_dim

    # BN0 (after inp_layer ReLU) folded into the following Linear (w1, b1).
    s0 = p["g0"] / jnp.sqrt(p["v0"] + BN_EPS)
    sh0 = p["be0"] - p["m0"] * s0
    w1f = p["w1"] * s0.reshape(d0, 1)
    b1f = p["b1"] + sh0 @ p["w1"]

    # BN1 (after main_block ReLU) folded into out_layer (wo, bo).
    s1 = p["g1"] / jnp.sqrt(p["v1"] + BN_EPS)
    sh1 = p["be1"] - p["m1"] * s1
    wof = p["wo"] * s1.reshape(d1, 1)
    bof = p["bo"] + sh1 @ p["wo"]

    # g-head BN folded into its (bias-free) first Linear.
    sg = p["gg"] / jnp.sqrt(p["gv"] + BN_EPS)
    gw1f = p["gw1"] * sg                      # [out_dim, 512]
    gb1f = p["gbe"] - p["gm"] * sg            # [1, 512]

    # Compose feature -> heads (no nonlinearity in between), in f32.
    w_feat = _place(wof, d1, PACK, off_feat)              # feature at lanes 0:out_dim
    b_feat = _place(bof, 1, PACK, off_feat)
    w_g = wof @ gw1f                                      # [d1, 512]
    b_g = bof @ gw1f + gb1f                               # [1, 512]
    w_tree = _place(wof @ p["tw"], d1, PACK, off_tree)    # tree at lanes off_tree:...
    b_tree = _place(bof @ p["tw"] + p["tb"], 1, PACK, off_tree)
    w_big = jnp.concatenate([w_feat, w_g, w_tree], axis=1)   # [d1, 2*PACK + 512]
    b_big = jnp.concatenate([b_feat, b_g, b_tree], axis=1)

    gw2p = _place(p["gw2"], GHID, PACK, off_out)           # out at lanes off_out:...
    gb2p = _place(p["gb2"], 1, PACK, off_out)

    kp = [
        p["w0"].astype(jnp.bfloat16), p["b0"].astype(jnp.float32),
        w1f.astype(jnp.bfloat16), b1f.astype(jnp.float32),
        w_big.astype(jnp.bfloat16), b_big.astype(jnp.float32),
        gw2p.astype(jnp.bfloat16), gb2p.astype(jnp.float32),
    ]
    dims = dict(out_dim=out_dim, proj_dim=proj_dim, tree_dim=tree_dim,
                PACK=PACK, off_out=off_out, off_tree=off_tree, d0=d0, d1=d1)
    return kp, dims


def cohiclust_forward(x, params, *, tile_b=None):
    """x: [B, inp_dim] float32.  params: dict of raw (PyTorch-shaped) arrays."""
    kp, dims = prepare_params(params)
    B, inp_dim = x.shape
    PACK = dims["PACK"]

    if tile_b is None:
        # Generation-aware tile cap: 2048 on 128-MiB-VMEM chips (v5e/v6e),
        # 1024 on v7x (64 MiB/TC).  For small B use a single grid step so the
        # parameter DMAs / per-step overhead are not duplicated.
        try:
            info = pltpu.get_tpu_info()
            vmem = getattr(info, "vmem_capacity_bytes", 64 << 20)
        except Exception:
            vmem = 64 << 20
        cap = 2048 if vmem >= (96 << 20) else 1024
        tile_b = min(cap, 8 * pl.cdiv(B, 8))
        tile_b = max(8, (tile_b // 8) * 8)

    n_steps = pl.cdiv(B, tile_b)
    Bp = n_steps * tile_b
    xb = x.astype(jnp.bfloat16)
    if Bp != B:
        xb = jnp.pad(xb, ((0, Bp - B), (0, 0)))

    def param_spec(a):
        # Small, grid-invariant parameter resident every step.
        return pl.BlockSpec(a.shape, lambda i: (0, 0))

    in_specs = [pl.BlockSpec((tile_b, inp_dim), lambda i: (i, 0))]
    in_specs += [param_spec(a) for a in kp]
    out_specs = pl.BlockSpec((tile_b, PACK), lambda i: (i, 0))
    out_shape = jax.ShapeDtypeStruct((Bp, PACK), jnp.float32)

    d0, d1 = dims["d0"], dims["d1"]
    flops = 2 * Bp * (inp_dim * d0 + d0 * d1 + d1 * (2 * PACK + GHID) + GHID * PACK)
    bytes_accessed = (2 * int(xb.size)
                      + sum(int(a.size) * a.dtype.itemsize for a in kp)
                      + 4 * Bp * PACK)
    transcendentals = Bp * (dims["tree_dim"] + 2)   # real sigmoids + 2 rsqrts per row
    cost = pl.CostEstimate(flops=int(flops), transcendentals=int(transcendentals),
                           bytes_accessed=int(bytes_accessed))

    kernel = functools.partial(
        cohiclust_kernel, pack=PACK,
        off_tree=dims["off_tree"], tree_dim=dims["tree_dim"])

    packed = pl.pallas_call(
        kernel,
        grid_spec=pltpu.PrefetchScalarGridSpec(
            num_scalar_prefetch=0,
            grid=(n_steps,),
            in_specs=in_specs,
            out_specs=out_specs,
        ),
        out_shape=out_shape,
        compiler_params=pltpu.CompilerParams(
            dimension_semantics=("parallel",)),
        cost_estimate=cost,
    )(xb, *kp)

    feat = packed[:B, 0:dims["out_dim"]]
    out = packed[:B, dims["off_out"]:dims["off_out"] + dims["proj_dim"]]
    tree = packed[:B, dims["off_tree"]:dims["off_tree"] + dims["tree_dim"]]
    return feat, out, tree


def reference_forward(x, p):
    """Pure-JAX eval-mode reference (mirrors the PyTorch module, f32)."""
    def bn(h, g, be, m, v):
        return (h - m) / jnp.sqrt(v + BN_EPS) * g + be

    def norm(a):
        n = jnp.sqrt(jnp.sum(a * a, axis=-1, keepdims=True))
        return a / jnp.maximum(n, NORM_EPS)

    h = jnp.maximum(x @ p["w0"] + p["b0"], 0.0)
    h = bn(h, p["g0"], p["be0"], p["m0"], p["v0"])
    h = jnp.maximum(h @ p["w1"] + p["b1"], 0.0)
    h = bn(h, p["g1"], p["be1"], p["m1"], p["v1"])
    feature = h @ p["wo"] + p["bo"]
    z = jnp.maximum(bn(feature @ p["gw1"], p["gg"], p["gbe"], p["gm"], p["gv"]), 0.0)
    out = z @ p["gw2"] + p["gb2"]
    tree = jax.nn.sigmoid(feature @ p["tw"] + p["tb"])
    return norm(feature), norm(out), tree


def make_params(key, inp_dim, linear_dims, out_dim, proj_dim, tree_dim):
    """Deterministic synthetic params (PyTorch shapes, weights pre-transposed)."""
    ks = iter(jax.random.split(key, 64))

    def lin(fan_in, fan_out):
        w = jax.random.normal(next(ks), (fan_in, fan_out), jnp.float32) * 0.05
        b = jax.random.normal(next(ks), (1, fan_out), jnp.float32) * 0.02
        return w, b

    def bn(dim):
        gamma = jax.random.uniform(next(ks), (1, dim), jnp.float32, 0.5, 1.5)
        beta = jax.random.normal(next(ks), (1, dim), jnp.float32) * 0.02
        mean = jax.random.normal(next(ks), (1, dim), jnp.float32) * 0.05
        var = jax.random.uniform(next(ks), (1, dim), jnp.float32, 0.5, 1.5)
        return gamma, beta, mean, var

    d0, d1 = linear_dims
    p = {}
    # f.inp_layer
    p["w0"], p["b0"] = lin(inp_dim, d0)
    p["g0"], p["be0"], p["m0"], p["v0"] = bn(d0)
    # f.main_block[0]
    p["w1"], p["b1"] = lin(d0, d1)
    p["g1"], p["be1"], p["m1"], p["v1"] = bn(d1)
    # f.out_layer
    p["wo"], p["bo"] = lin(d1, out_dim)
    # g head: Linear(out_dim, 512, bias=False) -> BN(512) -> ReLU -> Linear(512, proj_dim)
    p["gw1"] = jax.random.normal(next(ks), (out_dim, GHID), jnp.float32) * 0.05
    p["gg"], p["gbe"], p["gm"], p["gv"] = bn(GHID)
    p["gw2"], p["gb2"] = lin(GHID, proj_dim)
    # tree head
    p["tw"], p["tb"] = lin(out_dim, tree_dim)
    return p


if __name__ == "__main__":
    # Config consistent with the module:
    #   cfg.model.inp_dim = 32, linear_dims_list = [64, 32], out_dim = 16
    #   cfg.simclr.feature_dim_projection_head = 16
    #   cfg.tree.tree_level = 3  ->  tree_dim = 2**4 - 1 - 2**3 = 7
    B = 256
    INP_DIM = 32
    LINEAR_DIMS = (64, 32)
    OUT_DIM = 16
    PROJ_DIM = 16
    TREE_LEVEL = 3
    TREE_DIM = 2 ** (TREE_LEVEL + 1) - 1 - 2 ** TREE_LEVEL  # 7

    key = jax.random.PRNGKey(0)
    k_x, k_p = jax.random.split(key)
    x = jax.random.normal(k_x, (B, INP_DIM), jnp.float32)
    params = make_params(k_p, INP_DIM, LINEAR_DIMS, OUT_DIM, PROJ_DIM, TREE_DIM)

    feat_n, out_n, tree = cohiclust_forward(x, params)
    jax.block_until_ready((feat_n, out_n, tree))

    assert feat_n.shape == (B, OUT_DIM)
    assert out_n.shape == (B, PROJ_DIM)
    assert tree.shape == (B, TREE_DIM)

    ref_feat, ref_out, ref_tree = reference_forward(x, params)
    # bf16 MXU path with f32 accumulation: ~0.1-0.5% relative error on the
    # L2-normalized outputs vs the f32 reference -> 2e-2 absolute tolerance.
    np.testing.assert_allclose(np.asarray(feat_n), np.asarray(ref_feat), atol=2e-2, rtol=0)
    np.testing.assert_allclose(np.asarray(out_n), np.asarray(ref_out), atol=2e-2, rtol=0)
    np.testing.assert_allclose(np.asarray(tree), np.asarray(ref_tree), atol=2e-2, rtol=0)

    print("KERNEL_OK")
</pallas_src>

<mosaic_0001>
module attributes {stable_mosaic.version = 11 : i64} {
  func.func @cohiclust_kernel(%arg0: i32, %arg1: memref<256x32xbf16, #tpu.memory_space<vmem>>, %arg2: memref<32x64xbf16, #tpu.memory_space<vmem>>, %arg3: memref<1x64xf32, #tpu.memory_space<vmem>>, %arg4: memref<64x32xbf16, #tpu.memory_space<vmem>>, %arg5: memref<1x32xf32, #tpu.memory_space<vmem>>, %arg6: memref<32x768xbf16, #tpu.memory_space<vmem>>, %arg7: memref<1x768xf32, #tpu.memory_space<vmem>>, %arg8: memref<512x128xbf16, #tpu.memory_space<vmem>>, %arg9: memref<1x128xf32, #tpu.memory_space<vmem>>, %arg10: memref<256x128xf32, #tpu.memory_space<vmem>>) attributes {dimension_semantics = [#tpu.dimension_semantics<parallel>], iteration_bounds = array<i64: 1>, scalar_prefetch = 0 : i64, scratch_operands = 0 : i64, tpu.core_type = #tpu.core_type<tc>, window_params = [{transform_indices = @transform_0, window_bounds = array<i64: 256, 32>}, {pipeline_mode = #tpu.pipeline_mode<synchronous>, transform_indices = @transform_1, window_bounds = array<i64: 32, 64>}, {pipeline_mode = #tpu.pipeline_mode<synchronous>, transform_indices = @transform_2, window_bounds = array<i64: 1, 64>}, {pipeline_mode = #tpu.pipeline_mode<synchronous>, transform_indices = @transform_3, window_bounds = array<i64: 64, 32>}, {pipeline_mode = #tpu.pipeline_mode<synchronous>, transform_indices = @transform_4, window_bounds = array<i64: 1, 32>}, {pipeline_mode = #tpu.pipeline_mode<synchronous>, transform_indices = @transform_5, window_bounds = array<i64: 32, 768>}, {pipeline_mode = #tpu.pipeline_mode<synchronous>, transform_indices = @transform_6, window_bounds = array<i64: 1, 768>}, {pipeline_mode = #tpu.pipeline_mode<synchronous>, transform_indices = @transform_7, window_bounds = array<i64: 512, 128>}, {pipeline_mode = #tpu.pipeline_mode<synchronous>, transform_indices = @transform_8, window_bounds = array<i64: 1, 128>}, {transform_indices = @transform_9, window_bounds = array<i64: 256, 128>}]} {
    %c0 = arith.constant 0 : index
    %c0_0 = arith.constant 0 : index
    %0 = vector.load %arg1[%c0, %c0_0] : memref<256x32xbf16, #tpu.memory_space<vmem>>, vector<256x32xbf16>
    %c0_1 = arith.constant 0 : index
    %c0_2 = arith.constant 0 : index
    %1 = vector.load %arg2[%c0_1, %c0_2] : memref<32x64xbf16, #tpu.memory_space<vmem>>, vector<32x64xbf16>
    %cst = arith.constant dense<0.000000e+00> : vector<256x64xf32>
    %2 = tpu.matmul %0, %1, %cst {dimension_numbers = #tpu.dot_dimension_numbers<[1], [0], [0], [1], [0, 0, 1, 1], [], []>} : vector<256x32xbf16>, vector<32x64xbf16>, vector<256x64xf32> -> vector<256x64xf32>
    %c0_3 = arith.constant 0 : index
    %c0_4 = arith.constant 0 : index
    %3 = vector.load %arg3[%c0_3, %c0_4] : memref<1x64xf32, #tpu.memory_space<vmem>>, vector<1x64xf32>
    %4 = vector.broadcast %3 : vector<1x64xf32> to vector<256x64xf32>
    %5 = arith.addf %2, %4 : vector<256x64xf32>
    %cst_5 = arith.constant 0.000000e+00 : f32
    %6 = vector.broadcast %cst_5 : f32 to vector<256x64xf32>
    %7 = arith.maximumf %5, %6 : vector<256x64xf32>
    %8 = arith.truncf %7 : vector<256x64xf32> to vector<256x64xbf16>
    %c0_6 = arith.constant 0 : index
    %c0_7 = arith.constant 0 : index
    %9 = vector.load %arg4[%c0_6, %c0_7] : memref<64x32xbf16, #tpu.memory_space<vmem>>, vector<64x32xbf16>
    %cst_8 = arith.constant dense<0.000000e+00> : vector<256x32xf32>
    %10 = tpu.matmul %8, %9, %cst_8 {dimension_numbers = #tpu.dot_dimension_numbers<[1], [0], [0], [1], [0, 0, 1, 1], [], []>} : vector<256x64xbf16>, vector<64x32xbf16>, vector<256x32xf32> -> vector<256x32xf32>
    %c0_9 = arith.constant 0 : index
    %c0_10 = arith.constant 0 : index
    %11 = vector.load %arg5[%c0_9, %c0_10] : memref<1x32xf32, #tpu.memory_space<vmem>>, vector<1x32xf32>
    %12 = vector.broadcast %11 : vector<1x32xf32> to vector<256x32xf32>
    %13 = arith.addf %10, %12 : vector<256x32xf32>
    %cst_11 = arith.constant 0.000000e+00 : f32
    %14 = vector.broadcast %cst_11 : f32 to vector<256x32xf32>
    %15 = arith.maximumf %13, %14 : vector<256x32xf32>
    %16 = arith.truncf %15 : vector<256x32xf32> to vector<256x32xbf16>
    %c0_12 = arith.constant 0 : index
    %c0_13 = arith.constant 0 : index
    %17 = vector.load %arg6[%c0_12, %c0_13] : memref<32x768xbf16, #tpu.memory_space<vmem>>, vector<32x768xbf16>
    %cst_14 = arith.constant dense<0.000000e+00> : vector<256x768xf32>
    %18 = tpu.matmul %16, %17, %cst_14 {dimension_numbers = #tpu.dot_dimension_numbers<[1], [0], [0], [1], [0, 0, 1, 1], [], []>} : vector<256x32xbf16>, vector<32x768xbf16>, vector<256x768xf32> -> vector<256x768xf32>
    %c0_15 = arith.constant 0 : index
    %c0_16 = arith.constant 0 : index
    %19 = vector.load %arg7[%c0_15, %c0_16] : memref<1x768xf32, #tpu.memory_space<vmem>>, vector<1x768xf32>
    %20 = vector.broadcast %19 : vector<1x768xf32> to vector<256x768xf32>
    %21 = arith.addf %18, %20 : vector<256x768xf32>
    %22 = vector.extract_strided_slice %21 {offsets = [0, 0], sizes = [256, 128], strides = [1, 1]} : vector<256x768xf32> to vector<256x128xf32>
    %23 = vector.extract_strided_slice %21 {offsets = [0, 128], sizes = [256, 512], strides = [1, 1]} : vector<256x768xf32> to vector<256x512xf32>
    %cst_17 = arith.constant 0.000000e+00 : f32
    %24 = vector.broadcast %cst_17 : f32 to vector<256x512xf32>
    %25 = arith.maximumf %23, %24 : vector<256x512xf32>
    %26 = vector.extract_strided_slice %21 {offsets = [0, 640], sizes = [256, 128], strides = [1, 1]} : vector<256x768xf32> to vector<256x128xf32>
    %27 = arith.truncf %25 : vector<256x512xf32> to vector<256x512xbf16>
    %c0_18 = arith.constant 0 : index
    %c0_19 = arith.constant 0 : index
    %28 = vector.load %arg8[%c0_18, %c0_19] : memref<512x128xbf16, #tpu.memory_space<vmem>>, vector<512x128xbf16>
    %cst_20 = arith.constant dense<0.000000e+00> : vector<256x128xf32>
    %29 = tpu.matmul %27, %28, %cst_20 {dimension_numbers = #tpu.dot_dimension_numbers<[1], [0], [0], [1], [0, 0, 1, 1], [], []>} : vector<256x512xbf16>, vector<512x128xbf16>, vector<256x128xf32> -> vector<256x128xf32>
    %c0_21 = arith.constant 0 : index
    %c0_22 = arith.constant 0 : index
    %30 = vector.load %arg9[%c0_21, %c0_22] : memref<1x128xf32, #tpu.memory_space<vmem>>, vector<1x128xf32>
    %31 = vector.broadcast %30 : vector<1x128xf32> to vector<256x128xf32>
    %32 = arith.addf %29, %31 : vector<256x128xf32>
    %33 = tpu.iota {dimensions = array<i32: 1>} : vector<256x128xi32>
    %c32_i32 = arith.constant 32 : i32
    %34 = vector.broadcast %c32_i32 : i32 to vector<256x128xi32>
    %35 = arith.cmpi sge, %33, %34 : vector<256x128xi32>
    %c39_i32 = arith.constant 39 : i32
    %36 = vector.broadcast %c39_i32 : i32 to vector<256x128xi32>
    %37 = arith.cmpi slt, %33, %36 : vector<256x128xi32>
    %38 = arith.andi %35, %37 : vector<256x128xi1>
    %39 = arith.negf %26 : vector<256x128xf32>
    %40 = math.exp %39 : vector<256x128xf32>
    %cst_23 = arith.constant 1.000000e+00 : f32
    %41 = vector.broadcast %cst_23 : f32 to vector<256x128xf32>
    %42 = arith.addf %41, %40 : vector<256x128xf32>
    %43 = arith.divf %41, %42 : vector<256x128xf32>
    %cst_24 = arith.constant 0.000000e+00 : f32
    %44 = vector.broadcast %cst_24 : f32 to vector<256x128xf32>
    %45 = arith.select %38, %43, %44 : vector<256x128xi1>, vector<256x128xf32>
    %46 = arith.mulf %22, %22 : vector<256x128xf32>
    %cst_25 = arith.constant dense<0.000000e+00> : vector<256xf32>
    %47 = vector.multi_reduction <add>, %46, %cst_25 [1] : vector<256x128xf32> to vector<256xf32>
    %48 = vector.shape_cast %47 : vector<256xf32> to vector<256x1xf32>
    %cst_26 = arith.constant 1.000000e-24 : f32
    %49 = vector.broadcast %cst_26 : f32 to vector<256x1xf32>
    %50 = arith.maximumf %48, %49 : vector<256x1xf32>
    %51 = math.rsqrt %50 : vector<256x1xf32>
    %52 = vector.broadcast %51 : vector<256x1xf32> to vector<256x128xf32>
    %53 = arith.mulf %22, %52 : vector<256x128xf32>
    %54 = arith.mulf %32, %32 : vector<256x128xf32>
    %cst_27 = arith.constant dense<0.000000e+00> : vector<256xf32>
    %55 = vector.multi_reduction <add>, %54, %cst_27 [1] : vector<256x128xf32> to vector<256xf32>
    %56 = vector.shape_cast %55 : vector<256xf32> to vector<256x1xf32>
    %cst_28 = arith.constant 1.000000e-24 : f32
    %57 = vector.broadcast %cst_28 : f32 to vector<256x1xf32>
    %58 = arith.maximumf %56, %57 : vector<256x1xf32>
    %59 = math.rsqrt %58 : vector<256x1xf32>
    %60 = vector.broadcast %59 : vector<256x1xf32> to vector<256x128xf32>
    %61 = arith.mulf %32, %60 : vector<256x128xf32>
    %62 = arith.addf %53, %61 : vector<256x128xf32>
    %63 = arith.addf %62, %45 : vector<256x128xf32>
    %c0_29 = arith.constant 0 : index
    %c0_30 = arith.constant 0 : index
    %64 = vector.load %arg10[%c0_29, %c0_30] : memref<256x128xf32, #tpu.memory_space<vmem>>, vector<256x128xf32>
    tpu.vector_store %arg10[%c0_29, %c0_30], %63 {strides = array<i32>} : memref<256x128xf32, #tpu.memory_space<vmem>>, vector<256x128xf32>,
    return
  }
  func.func @transform_0(%arg0: i32) -> (i32, i32) {
    %c0_i32 = arith.constant 0 : i32
    %c0_i32_0 = arith.constant 0 : i32
    return %arg0, %c0_i32 : i32, i32
  }
  func.func @transform_1(%arg0: i32) -> (i32, i32) {
    %c0_i32 = arith.constant 0 : i32
    %c0_i32_0 = arith.constant 0 : i32
    %c0_i32_1 = arith.constant 0 : i32
    return %c0_i32, %c0_i32_0 : i32, i32
  }
  func.func @transform_2(%arg0: i32) -> (i32, i32) {
    %c0_i32 = arith.constant 0 : i32
    %c0_i32_0 = arith.constant 0 : i32
    %c0_i32_1 = arith.constant 0 : i32
    return %c0_i32, %c0_i32_0 : i32, i32
  }
  func.func @transform_3(%arg0: i32) -> (i32, i32) {
    %c0_i32 = arith.constant 0 : i32
    %c0_i32_0 = arith.constant 0 : i32
    %c0_i32_1 = arith.constant 0 : i32
    return %c0_i32, %c0_i32_0 : i32, i32
  }
  func.func @transform_4(%arg0: i32) -> (i32, i32) {
    %c0_i32 = arith.constant 0 : i32
    %c0_i32_0 = arith.constant 0 : i32
    %c0_i32_1 = arith.constant 0 : i32
    return %c0_i32, %c0_i32_0 : i32, i32
  }
  func.func @transform_5(%arg0: i32) -> (i32, i32) {
    %c0_i32 = arith.constant 0 : i32
    %c0_i32_0 = arith.constant 0 : i32
    %c0_i32_1 = arith.constant 0 : i32
    return %c0_i32, %c0_i32_0 : i32, i32
  }
  func.func @transform_6(%arg0: i32) -> (i32, i32) {
    %c0_i32 = arith.constant 0 : i32
    %c0_i32_0 = arith.constant 0 : i32
    %c0_i32_1 = arith.constant 0 : i32
    return %c0_i32, %c0_i32_0 : i32, i32
  }
  func.func @transform_7(%arg0: i32) -> (i32, i32) {
    %c0_i32 = arith.constant 0 : i32
    %c0_i32_0 = arith.constant 0 : i32
    %c0_i32_1 = arith.constant 0 : i32
    return %c0_i32, %c0_i32_0 : i32, i32
  }
  func.func @transform_8(%arg0: i32) -> (i32, i32) {
    %c0_i32 = arith.constant 0 : i32
    %c0_i32_0 = arith.constant 0 : i32
    %c0_i32_1 = arith.constant 0 : i32
    return %c0_i32, %c0_i32_0 : i32, i32
  }
  func.func @transform_9(%arg0: i32) -> (i32, i32) {
    %c0_i32 = arith.constant 0 : i32
    %c0_i32_0 = arith.constant 0 : i32
    return %arg0, %c0_i32 : i32, i32
  }
}

</mosaic_0001>

<llo_original>
// kernel: tpu_custom_call.1
$region0: #{tpu_custom_call.1}
  #allocation0 [shape = 'u32[]', space=smem, size = 0x4, offset = 0x4, fixed_abs, tag = 'smem constant byte address 0x4 - core index']
  #allocation1 [shape = 'u32[144,128]{1,0:T(1,128)}', space=vmem, size = 0x12000, scoped, tag = 'internal scratch']
  %s0 = inlined_call_operand.vmem [shape: bf16[256,32], index: 0, kind: input, shape index: {}]
  %s1 = inlined_call_operand.vmem [shape: bf16[32,64], index: 1, kind: input, shape index: {}]
  %s2 = inlined_call_operand.vmem [shape: f32[1,64], index: 2, kind: input, shape index: {}]
  %s3 = inlined_call_operand.vmem [shape: bf16[64,32], index: 3, kind: input, shape index: {}]
  %s4 = inlined_call_operand.vmem [shape: f32[1,32], index: 4, kind: input, shape index: {}]
  %s5 = inlined_call_operand.vmem [shape: bf16[32,768], index: 5, kind: input, shape index: {}]
  %s6 = inlined_call_operand.vmem [shape: f32[1,768], index: 6, kind: input, shape index: {}]
  %s7 = inlined_call_operand.hbm [shape: bf16[512,128], index: 7, kind: input, shape index: {}]
  %s8 = inlined_call_operand.vmem [shape: f32[1,128], index: 8, kind: input, shape index: {}]
  %s9 = inlined_call_operand.hbm [shape: f32[256,128], index: 9, kind: output, shape index: {}]
  %s10 = sld [smem:[#allocation0]]
  $region50: #{tpu_custom_call.1} parent=0
    _
  %s12 = ssub.s32 1, %s10
  %s13 = scalar_select 0, %s12, %s10
  $region1: #{tpu_custom_call.1} parent=0
    #allocation2 [shape = 'u8[131072]{0}', space=vmem, size = 0x20000, scoped, tag = 'input window, operand 7, single buffered']
    #allocation3 [shape = 's32[1]{0}', space=sflag, size = 0x4, scoped, tag = 'scoped memory for tpu_custom_call.1']
    #allocation4 [shape = 's32[1]{0}', space=sflag, size = 0x4, scoped, tag = 'scoped memory for tpu_custom_call.1']
    #allocation5 [shape = 'u8[131072]{0}', space=vmem, size = 0x20000, scoped, tag = 'output window, operand 0, single buffered']
    %14 = vsyncpa [#allocation3], 0
    %15 = vsyncpa [#allocation4], 0
    // Predicated region
    $region2: #{tpu_custom_call.1} parent=1 // pred_check
      _
    $region3: #{tpu_custom_call.1} parent=1 // pred_check_branch
      %17 = sbr.rel (0) target = $region5
    $region4: #{tpu_custom_call.1} parent=1 // pred_region
      _
    $region5: #{tpu_custom_call.1} parent=1 // pred_fallthru
      _
    // Predicated region
    $region6: #{tpu_custom_call.1} parent=1 // pred_check
      _
    $region7: #{tpu_custom_call.1} parent=1 // pred_check_branch
      %19 = sbr.rel (0) target = $region9
    $region8: #{tpu_custom_call.1} parent=1 // pred_region
      _
    $region9: #{tpu_custom_call.1} parent=1 // pred_fallthru
      _
    // Predicated region
    $region10: #{tpu_custom_call.1} parent=1 // pred_check
      _
    $region11: #{tpu_custom_call.1} parent=1 // pred_check_branch
      %21 = sbr.rel (0) target = $region13
    $region12: #{tpu_custom_call.1} parent=1 // pred_region
      _
    $region13: #{tpu_custom_call.1} parent=1 // pred_fallthru
      _
    // Predicated region
    $region14: #{tpu_custom_call.1} parent=1 // pred_check
      _
    $region15: #{tpu_custom_call.1} parent=1 // pred_check_branch
      %23 = sbr.rel (0) target = $region17
    $region16: #{tpu_custom_call.1} parent=1 // pred_region
      _
    $region17: #{tpu_custom_call.1} parent=1 // pred_fallthru
      _
    // Predicated region
    $region18: #{tpu_custom_call.1} parent=1 // pred_check
      _
    $region19: #{tpu_custom_call.1} parent=1 // pred_check_branch
      %25 = sbr.rel (0) target = $region21
    $region20: #{tpu_custom_call.1} parent=1 // pred_region
      _
    $region21: #{tpu_custom_call.1} parent=1 // pred_fallthru
      _
    // Predicated region
    $region22: #{tpu_custom_call.1} parent=1 // pred_check
      _
    $region23: #{tpu_custom_call.1} parent=1 // pred_check_branch
      %27 = sbr.rel (0) target = $region25
    $region24: #{tpu_custom_call.1} parent=1 // pred_region
      _
    $region25: #{tpu_custom_call.1} parent=1 // pred_fallthru
      _
    // Predicated region
    $region26: #{tpu_custom_call.1} parent=1 // pred_check
      _
    $region27: #{tpu_custom_call.1} parent=1 // pred_check_branch
      %29 = sbr.rel (0) target = $region29
    $region28: #{tpu_custom_call.1} parent=1 // pred_region
      _
    $region29: #{tpu_custom_call.1} parent=1 // pred_fallthru
      _
    // Predicated region
    $region30: #{tpu_custom_call.1} parent=1 // pred_check
      _
    $region31: #{tpu_custom_call.1} parent=1 // pred_check_branch
      %31 = sbr.rel (0) target = $region33
    $region32: #{tpu_custom_call.1} parent=1 // pred_region
      %s33 = ssub.s32 4096, 4096
      %34 = vsyncadd [#allocation3], %s33
      %s35 = sshll.u32 [#allocation2], 4
      %s36 = int_to_ptr.vmem [resolvable:$true] %s35
      %41 = dma.hbm_to_vmem [thread:$0]  %s7, 4096, %s36, [#allocation3], 64, 64, 4
    $region33: #{tpu_custom_call.1} parent=1 // pred_fallthru
      _
    // Predicated region
    $region34: #{tpu_custom_call.1} parent=1 // pred_check
      _
    $region35: #{tpu_custom_call.1} parent=1 // pred_check_branch
      %43 = sbr.rel (0) target = $region37
    $region36: #{tpu_custom_call.1} parent=1 // pred_region
      _
    $region37: #{tpu_custom_call.1} parent=1 // pred_fallthru
      _
    // Predicated region
    $region38: #{tpu_custom_call.1} parent=1 // pred_check
      _
    $region39: #{tpu_custom_call.1} parent=1 // pred_check_branch
      %45 = sbr.rel (0) target = $region41
    $region40: #{tpu_custom_call.1} parent=1 // pred_region
      %46 = dma.done [#allocation3], 4096
    $region41: #{tpu_custom_call.1} parent=1 // pred_fallthru
      _
    %v48 = vld [vmem:[%s0] sm:$0xf]
    %v49 = vld [vmem:[%s0 + $0x4] sm:$0xf]
    %v50 = vld [vmem:[%s0 + $0x8] sm:$0xf]
    %v51 = vld [vmem:[%s0 + $0xc] sm:$0xf]
    %v52 = vld [vmem:[%s0 + $0x10] sm:$0xf]
    %v53 = vld [vmem:[%s0 + $0x14] sm:$0xf]
    %v54 = vld [vmem:[%s0 + $0x18] sm:$0xf]
    %v55 = vld [vmem:[%s0 + $0x1c] sm:$0xf]
    %v56 = vld [vmem:[%s0 + $0x20] sm:$0xf]
    %v57 = vld [vmem:[%s0 + $0x24] sm:$0xf]
    %v58 = vld [vmem:[%s0 + $0x28] sm:$0xf]
    %v59 = vld [vmem:[%s0 + $0x2c] sm:$0xf]
    %v60 = vld [vmem:[%s0 + $0x30] sm:$0xf]
    %v61 = vld [vmem:[%s0 + $0x34] sm:$0xf]
    %v62 = vld [vmem:[%s0 + $0x38] sm:$0xf]
    %v63 = vld [vmem:[%s0 + $0x3c] sm:$0xf]
    %v64 = vld [vmem:[%s0 + $0x40] sm:$0xf]
    %v65 = vld [vmem:[%s0 + $0x44] sm:$0xf]
    %v66 = vld [vmem:[%s0 + $0x48] sm:$0xf]
    %v67 = vld [vmem:[%s0 + $0x4c] sm:$0xf]
    %v68 = vld [vmem:[%s0 + $0x50] sm:$0xf]
    %v69 = vld [vmem:[%s0 + $0x54] sm:$0xf]
    %v70 = vld [vmem:[%s0 + $0x58] sm:$0xf]
    %v71 = vld [vmem:[%s0 + $0x5c] sm:$0xf]
    %v72 = vld [vmem:[%s0 + $0x60] sm:$0xf]
    %v73 = vld [vmem:[%s0 + $0x64] sm:$0xf]
    %v74 = vld [vmem:[%s0 + $0x68] sm:$0xf]
    %v75 = vld [vmem:[%s0 + $0x6c] sm:$0xf]
    %v76 = vld [vmem:[%s0 + $0x70] sm:$0xf]
    %v77 = vld [vmem:[%s0 + $0x74] sm:$0xf]
    %v78 = vld [vmem:[%s0 + $0x78] sm:$0xf]
    %v79 = vld [vmem:[%s0 + $0x7c] sm:$0xf]
    %v80 = vld [vmem:[%s1] sm:$0xf]
    %v81 = vld [vmem:[%s1 + $0x4] sm:$0xf]
    %v82 = vld [vmem:[%s1 + $0x8] sm:$0xf]
    %v83 = vld [vmem:[%s1 + $0xc] sm:$0xf]
    %v84 = vld [vmem:[%s2] sm:$0x1]
    %v86 = vlaneseq
    %v87 = vshrl.u32 %v86, 7
    %v88 = vsub.s32 0, %v87
    %v89 = vrot.slane %v84, %v88
    %v123 = vunpack.c.l.b16 %v48
    %v124 = vunpack.c.l.b16 %v49
    %v125 = vunpack.c.l.b16 %v50
    %v126 = vunpack.c.l.b16 %v51
    %v127 = vunpack.c.l.b16 %v52
    %v128 = vunpack.c.l.b16 %v53
    %v129 = vunpack.c.l.b16 %v54
    %v130 = vunpack.c.l.b16 %v55
    %v131 = vunpack.c.l.b16 %v56
    %v132 = vunpack.c.l.b16 %v57
    %v133 = vunpack.c.l.b16 %v58
    %v134 = vunpack.c.l.b16 %v59
    %v135 = vunpack.c.l.b16 %v60
    %v136 = vunpack.c.l.b16 %v61
    %v137 = vunpack.c.l.b16 %v62
    %v138 = vunpack.c.l.b16 %v63
    %v139 = vunpack.c.l.b16 %v64
    %v140 = vunpack.c.l.b16 %v65
    %v141 = vunpack.c.l.b16 %v66
    %v142 = vunpack.c.l.b16 %v67
    %v143 = vunpack.c.l.b16 %v68
    %v144 = vunpack.c.l.b16 %v69
    %v145 = vunpack.c.l.b16 %v70
    %v146 = vunpack.c.l.b16 %v71
    %v147 = vunpack.c.l.b16 %v72
    %v148 = vunpack.c.l.b16 %v73
    %v149 = vunpack.c.l.b16 %v74
    %v150 = vunpack.c.l.b16 %v75
    %v151 = vunpack.c.l.b16 %v76
    %v152 = vunpack.c.l.b16 %v77
    %v153 = vunpack.c.l.b16 %v78
    %v154 = vunpack.c.l.b16 %v79
    %v155 = vpack.c.b16 %v124, %v123
    %v156 = vpack.c.b16 %v126, %v125
    %v157 = vpack.c.b16 %v128, %v127
    %v158 = vpack.c.b16 %v130, %v129
    %v159 = vpack.c.b16 %v132, %v131
    %v160 = vpack.c.b16 %v134, %v133
    %v161 = vpack.c.b16 %v136, %v135
    %v162 = vpack.c.b16 %v138, %v137
    %v163 = vpack.c.b16 %v140, %v139
    %v164 = vpack.c.b16 %v142, %v141
    %v165 = vpack.c.b16 %v144, %v143
    %v166 = vpack.c.b16 %v146, %v145
    %v167 = vpack.c.b16 %v148, %v147
    %v168 = vpack.c.b16 %v150, %v149
    %v169 = vpack.c.b16 %v152, %v151
    %v170 = vpack.c.b16 %v154, %v153
    %v175 = vunpack.c.l.b16 %v80
    %v176 = vunpack.c.l.b16 %v81
    %v177 = vunpack.c.l.b16 %v82
    %v178 = vunpack.c.l.b16 %v83
    %v179 = vpack.c.b16 %v176, %v175
    %v180 = vpack.c.b16 %v178, %v177
    %vm183 = vcmask 261120
    %v185 = vsel %vm183, %v155, 0
    %v188 = vsel %vm183, %v156, 0
    %v191 = vsel %vm183, %v157, 0
    %v194 = vsel %vm183, %v158, 0
    %v197 = vsel %vm183, %v159, 0
    %v200 = vsel %vm183, %v160, 0
    %v203 = vsel %vm183, %v161, 0
    %v206 = vsel %vm183, %v162, 0
    %v209 = vsel %vm183, %v163, 0
    %v212 = vsel %vm183, %v164, 0
    %v215 = vsel %vm183, %v165, 0
    %v218 = vsel %vm183, %v166, 0
    %v221 = vsel %vm183, %v167, 0
    %v224 = vsel %vm183, %v168, 0
    %v227 = vsel %vm183, %v169, 0
    %v230 = vsel %vm183, %v170, 0
    %232 = vmatprep.subr.bf16.mxu0 0
    %233 = vmatpush1.bf16.msra.mxu0 %v179
    %234 = vmatprep.subr.bf16.mxu0 0
    %235 = vmatpush1.bf16.msra.mxu0 %v180
    %236 = vmatprep.subr.bf16.mxu0 0
    %237 = vmatpush1.bf16.msra.mxu0 0
    %238 = vmatprep.subr.bf16.mxu0 0
    %239 = vmatpush1.bf16.msra.mxu0 0
    %240 = vmatprep.subr.bf16.mxu0 0
    %241 = vmatpush1.bf16.msra.mxu0 0
    %242 = vmatprep.subr.bf16.mxu0 0
    %243 = vmatpush1.bf16.msra.mxu0 0
    %244 = vmatprep.subr.bf16.mxu0 0
    %245 = vmatpush1.bf16.msra.mxu0 0
    %246 = vmatprep.subr.bf16.mxu0 0
    %247 = vmatpush1.bf16.msra.mxu0 0
    %248 = vmatprep.subr.bf16.mxu0 0
    %249 = vmatpush1.bf16.msra.mxu0 0
    %250 = vmatprep.subr.bf16.mxu0 0
    %251 = vmatpush1.bf16.msra.mxu0 0
    %252 = vmatprep.subr.bf16.mxu0 0
    %253 = vmatpush1.bf16.msra.mxu0 0
    %254 = vmatprep.subr.bf16.mxu0 0
    %255 = vmatpush1.bf16.msra.mxu0 0
    %256 = vmatprep.subr.bf16.mxu0 0
    %257 = vmatpush1.bf16.msra.mxu0 0
    %258 = vmatprep.subr.bf16.mxu0 0
    %259 = vmatpush1.bf16.msra.mxu0 0
    %260 = vmatprep.subr.bf16.mxu0 0
    %261 = vmatpush1.bf16.msra.mxu0 0
    %262 = vmatprep.subr.bf16.mxu0 0
    %263 = vmatpush1.bf16.msra.mxu0 0
    %264 = vmatprep.mubr.bf16.mxu0 0
    %265 = vmatmul.mubr.bf16.gmra.mrb[0].mxu0 %v185
    %v266 = vpop.f32.mrb[0].mxu0
    %v267 = vadd.f32 %v89, %v266
    %v268 = vpop.f32.mrb[0].mxu0
    %v269 = vpop.f32.mrb[0].mxu0
    %v270 = vadd.f32 %v89, %v269
    %v271 = vpop.f32.mrb[0].mxu0
    %272 = vmatprep.mubr.bf16.mxu0 0
    %273 = vmatmul.mubr.bf16.gmra.mrb[0].mxu0 %v188
    %v274 = vpop.f32.mrb[0].mxu0
    %v275 = vadd.f32 %v89, %v274
    %v276 = vpop.f32.mrb[0].mxu0
    %v277 = vpop.f32.mrb[0].mxu0
    %v278 = vadd.f32 %v89, %v277
    %v279 = vpop.f32.mrb[0].mxu0
    %280 = vmatprep.mubr.bf16.mxu0 0
    %281 = vmatmul.mubr.bf16.gmra.mrb[0].mxu0 %v191
    %v282 = vpop.f32.mrb[0].mxu0
    %v283 = vadd.f32 %v89, %v282
    %v284 = vpop.f32.mrb[0].mxu0
    %v285 = vpop.f32.mrb[0].mxu0
    %v286 = vadd.f32 %v89, %v285
    %v287 = vpop.f32.mrb[0].mxu0
    %288 = vmatprep.mubr.bf16.mxu0 0
    %289 = vmatmul.mubr.bf16.gmra.mrb[0].mxu0 %v194
    %v290 = vpop.f32.mrb[0].mxu0
    %v291 = vadd.f32 %v89, %v290
    %v292 = vpop.f32.mrb[0].mxu0
    %v293 = vpop.f32.mrb[0].mxu0
    %v294 = vadd.f32 %v89, %v293
    %v295 = vpop.f32.mrb[0].mxu0
    %296 = vmatprep.mubr.bf16.mxu0 0
    %297 = vmatmul.mubr.bf16.gmra.mrb[0].mxu0 %v197
    %v298 = vpop.f32.mrb[0].mxu0
    %v299 = vadd.f32 %v89, %v298
    %v300 = vpop.f32.mrb[0].mxu0
    %v301 = vpop.f32.mrb[0].mxu0
    %v302 = vadd.f32 %v89, %v301
    %v303 = vpop.f32.mrb[0].mxu0
    %304 = vmatprep.mubr.bf16.mxu0 0
    %305 = vmatmul.mubr.bf16.gmra.mrb[0].mxu0 %v200
    %v306 = vpop.f32.mrb[0].mxu0
    %v307 = vadd.f32 %v89, %v306
    %v308 = vpop.f32.mrb[0].mxu0
    %v309 = vpop.f32.mrb[0].mxu0
    %v310 = vadd.f32 %v89, %v309
    %v311 = vpop.f32.mrb[0].mxu0
    %312 = vmatprep.mubr.bf16.mxu0 0
    %313 = vmatmul.mubr.bf16.gmra.mrb[0].mxu0 %v203
    %v314 = vpop.f32.mrb[0].mxu0
    %v315 = vadd.f32 %v89, %v314
    %v316 = vpop.f32.mrb[0].mxu0
    %v317 = vpop.f32.mrb[0].mxu0
    %v318 = vadd.f32 %v89, %v317
    %v319 = vpop.f32.mrb[0].mxu0
    %320 = vmatprep.mubr.bf16.mxu0 0
    %321 = vmatmul.mubr.bf16.gmra.mrb[0].mxu0 %v206
    %v322 = vpop.f32.mrb[0].mxu0
    %v323 = vadd.f32 %v89, %v322
    %v324 = vpop.f32.mrb[0].mxu0
    %v325 = vpop.f32.mrb[0].mxu0
    %v326 = vadd.f32 %v89, %v325
    %v327 = vpop.f32.mrb[0].mxu0
    %328 = vmatprep.mubr.bf16.mxu0 0
    %329 = vmatmul.mubr.bf16.gmra.mrb[0].mxu0 %v209
    %v330 = vpop.f32.mrb[0].mxu0
    %v331 = vadd.f32 %v89, %v330
    %v332 = vpop.f32.mrb[0].mxu0
    %v333 = vpop.f32.mrb[0].mxu0
    %v334 = vadd.f32 %v89, %v333
    %v335 = vpop.f32.mrb[0].mxu0
    %336 = vmatprep.mubr.bf16.mxu0 0
    %337 = vmatmul.mubr.bf16.gmra.mrb[0].mxu0 %v212
    %v338 = vpop.f32.mrb[0].mxu0
    %v339 = vadd.f32 %v89, %v338
    %v340 = vpop.f32.mrb[0].mxu0
    %v341 = vpop.f32.mrb[0].mxu0
    %v342 = vadd.f32 %v89, %v341
    %v343 = vpop.f32.mrb[0].mxu0
    %344 = vmatprep.mubr.bf16.mxu0 0
    %345 = vmatmul.mubr.bf16.gmra.mrb[0].mxu0 %v215
    %v346 = vpop.f32.mrb[0].mxu0
    %v347 = vadd.f32 %v89, %v346
    %v348 = vpop.f32.mrb[0].mxu0
    %v349 = vpop.f32.mrb[0].mxu0
    %v350 = vadd.f32 %v89, %v349
    %v351 = vpop.f32.mrb[0].mxu0
    %352 = vmatprep.mubr.bf16.mxu0 0
    %353 = vmatmul.mubr.bf16.gmra.mrb[0].mxu0 %v218
    %v354 = vpop.f32.mrb[0].mxu0
    %v355 = vadd.f32 %v89, %v354
    %v356 = vpop.f32.mrb[0].mxu0
    %v357 = vpop.f32.mrb[0].mxu0
    %v358 = vadd.f32 %v89, %v357
    %v359 = vpop.f32.mrb[0].mxu0
    %360 = vmatprep.mubr.bf16.mxu0 0
    %361 = vmatmul.mubr.bf16.gmra.mrb[0].mxu0 %v221
    %v362 = vpop.f32.mrb[0].mxu0
    %v363 = vadd.f32 %v89, %v362
    %v364 = vpop.f32.mrb[0].mxu0
    %v365 = vpop.f32.mrb[0].mxu0
    %v366 = vadd.f32 %v89, %v365
    %v367 = vpop.f32.mrb[0].mxu0
    %368 = vmatprep.mubr.bf16.mxu0 0
    %369 = vmatmul.mubr.bf16.gmra.mrb[0].mxu0 %v224
    %v370 = vpop.f32.mrb[0].mxu0
    %v371 = vadd.f32 %v89, %v370
    %v372 = vpop.f32.mrb[0].mxu0
    %v373 = vpop.f32.mrb[0].mxu0
    %v374 = vadd.f32 %v89, %v373
    %v375 = vpop.f32.mrb[0].mxu0
    %376 = vmatprep.mubr.bf16.mxu0 0
    %377 = vmatmul.mubr.bf16.gmra.mrb[0].mxu0 %v227
    %v378 = vpop.f32.mrb[0].mxu0
    %v379 = vadd.f32 %v89, %v378
    %v380 = vpop.f32.mrb[0].mxu0
    %v381 = vpop.f32.mrb[0].mxu0
    %v382 = vadd.f32 %v89, %v381
    %v383 = vpop.f32.mrb[0].mxu0
    %384 = vmatprep.mubr.bf16.mxu0 0
    %385 = vmatmul.mubr.bf16.gmra.mrb[0].mxu0 %v230
    %v386 = vpop.f32.mrb[0].mxu0
    %v387 = vadd.f32 %v89, %v386
    %v388 = vpop.f32.mrb[0].mxu0
    %v389 = vpop.f32.mrb[0].mxu0
    %v390 = vadd.f32 %v89, %v389
    %v391 = vpop.f32.mrb[0].mxu0
    %392 = vdwg.mxu0
    %v393 = vmax.f32 %v267, 0.0
    %v394 = vmax.f32 %v270, 0.0
    %v395 = vmax.f32 %v275, 0.0
    %v396 = vmax.f32 %v278, 0.0
    %v397 = vmax.f32 %v283, 0.0
    %v398 = vmax.f32 %v286, 0.0
    %v399 = vmax.f32 %v291, 0.0
    %v400 = vmax.f32 %v294, 0.0
    %v401 = vmax.f32 %v299, 0.0
    %v402 = vmax.f32 %v302, 0.0
    %v403 = vmax.f32 %v307, 0.0
    %v404 = vmax.f32 %v310, 0.0
    %v405 = vmax.f32 %v315, 0.0
    %v406 = vmax.f32 %v318, 0.0
    %v407 = vmax.f32 %v323, 0.0
    %v408 = vmax.f32 %v326, 0.0
    %v409 = vmax.f32 %v331, 0.0
    %v410 = vmax.f32 %v334, 0.0
    %v411 = vmax.f32 %v339, 0.0
    %v412 = vmax.f32 %v342, 0.0
    %v413 = vmax.f32 %v347, 0.0
    %v414 = vmax.f32 %v350, 0.0
    %v415 = vmax.f32 %v355, 0.0
    %v416 = vmax.f32 %v358, 0.0
    %v417 = vmax.f32 %v363, 0.0
    %v418 = vmax.f32 %v366, 0.0
    %v419 = vmax.f32 %v371, 0.0
    %v420 = vmax.f32 %v374, 0.0
    %v421 = vmax.f32 %v379, 0.0
    %v422 = vmax.f32 %v382, 0.0
    %v423 = vmax.f32 %v387, 0.0
    %v424 = vmax.f32 %v390, 0.0
    %v425 = vpack.c.bf16 %v394, %v393
    %v426 = vpack.c.bf16 %v396, %v395
    %v427 = vpack.c.bf16 %v398, %v397
    %v428 = vpack.c.bf16 %v400, %v399
    %v429 = vpack.c.bf16 %v402, %v401
    %v430 = vpack.c.bf16 %v404, %v403
    %v431 = vpack.c.bf16 %v406, %v405
    %v432 = vpack.c.bf16 %v408, %v407
    %v433 = vpack.c.bf16 %v410, %v409
    %v434 = vpack.c.bf16 %v412, %v411
    %v435 = vpack.c.bf16 %v414, %v413
    %v436 = vpack.c.bf16 %v416, %v415
    %v437 = vpack.c.bf16 %v418, %v417
    %v438 = vpack.c.bf16 %v420, %v419
    %v439 = vpack.c.bf16 %v422, %v421
    %v440 = vpack.c.bf16 %v424, %v423
    %v441 = vld [vmem:[%s3] sm:$0xf]
    %v442 = vld [vmem:[%s3 + $0x4] sm:$0xf]
    %v443 = vld [vmem:[%s3 + $0x8] sm:$0xf]
    %v444 = vld [vmem:[%s3 + $0xc] sm:$0xf]
    %v445 = vld [vmem:[%s3 + $0x10] sm:$0xf]
    %v446 = vld [vmem:[%s3 + $0x14] sm:$0xf]
    %v447 = vld [vmem:[%s3 + $0x18] sm:$0xf]
    %v448 = vld [vmem:[%s3 + $0x1c] sm:$0xf]
    %v449 = vld [vmem:[%s4] sm:$0x1]
    %v451 = vlaneseq
    %v452 = vshrl.u32 %v451, 7
    %v453 = vsub.s32 0, %v452
    %v454 = vrot.slane %v449, %v453
    %v464 = vunpack.c.l.b16 %v441
    %v465 = vunpack.c.l.b16 %v442
    %v466 = vunpack.c.l.b16 %v443
    %v467 = vunpack.c.l.b16 %v444
    %v468 = vunpack.c.l.b16 %v445
    %v469 = vunpack.c.l.b16 %v446
    %v470 = vunpack.c.l.b16 %v447
    %v471 = vunpack.c.l.b16 %v448
    %v472 = vpack.c.b16 %v465, %v464
    %v473 = vpack.c.b16 %v467, %v466
    %v474 = vpack.c.b16 %v469, %v468
    %v475 = vpack.c.b16 %v471, %v470
    %vm480 = vcmask 523264
    %v482 = vsel %vm480, %v425, 0
    %v485 = vsel %vm480, %v426, 0
    %v488 = vsel %vm480, %v427, 0
    %v491 = vsel %vm480, %v428, 0
    %v494 = vsel %vm480, %v429, 0
    %v497 = vsel %vm480, %v430, 0
    %v500 = vsel %vm480, %v431, 0
    %v503 = vsel %vm480, %v432, 0
    %v506 = vsel %vm480, %v433, 0
    %v509 = vsel %vm480, %v434, 0
    %v512 = vsel %vm480, %v435, 0
    %v515 = vsel %vm480, %v436, 0
    %v518 = vsel %vm480, %v437, 0
    %v521 = vsel %vm480, %v438, 0
    %v524 = vsel %vm480, %v439, 0
    %v527 = vsel %vm480, %v440, 0
    %529 = vmatprep.subr.bf16.mxu0 0
    %530 = vmatpush1.bf16.msra.mxu0 %v472
    %531 = vmatprep.subr.bf16.mxu0 0
    %532 = vmatpush1.bf16.msra.mxu0 %v473
    %533 = vmatprep.subr.bf16.mxu0 0
    %534 = vmatpush1.bf16.msra.mxu0 %v474
    %535 = vmatprep.subr.bf16.mxu0 0
    %536 = vmatpush1.bf16.msra.mxu0 %v475
    %537 = vmatprep.subr.bf16.mxu0 0
    %538 = vmatpush1.bf16.msra.mxu0 0
    %539 = vmatprep.subr.bf16.mxu0 0
    %540 = vmatpush1.bf16.msra.mxu0 0
    %541 = vmatprep.subr.bf16.mxu0 0
    %542 = vmatpush1.bf16.msra.mxu0 0
    %543 = vmatprep.subr.bf16.mxu0 0
    %544 = vmatpush1.bf16.msra.mxu0 0
    %545 = vmatprep.subr.bf16.mxu0 0
    %546 = vmatpush1.bf16.msra.mxu0 0
    %547 = vmatprep.subr.bf16.mxu0 0
    %548 = vmatpush1.bf16.msra.mxu0 0
    %549 = vmatprep.subr.bf16.mxu0 0
    %550 = vmatpush1.bf16.msra.mxu0 0
    %551 = vmatprep.subr.bf16.mxu0 0
    %552 = vmatpush1.bf16.msra.mxu0 0
    %553 = vmatprep.subr.bf16.mxu0 0
    %554 = vmatpush1.bf16.msra.mxu0 0
    %555 = vmatprep.subr.bf16.mxu0 0
    %556 = vmatpush1.bf16.msra.mxu0 0
    %557 = vmatprep.subr.bf16.mxu0 0
    %558 = vmatpush1.bf16.msra.mxu0 0
    %559 = vmatprep.subr.bf16.mxu0 0
    %560 = vmatpush1.bf16.msra.mxu0 0
    %561 = vmatprep.mubr.bf16.mxu0 0
    %562 = vmatmul.mubr.bf16.gmra.mrb[0].mxu0 %v482
    %v563 = vpop.f32.mrb[0].mxu0
    %v564 = vadd.f32 %v454, %v563
    %v565 = vpop.f32.mrb[0].mxu0
    %v566 = vpop.f32.mrb[0].mxu0
    %v567 = vadd.f32 %v454, %v566
    %v568 = vpop.f32.mrb[0].mxu0
    %569 = vmatprep.mubr.bf16.mxu0 0
    %570 = vmatmul.mubr.bf16.gmra.mrb[0].mxu0 %v485
    %v571 = vpop.f32.mrb[0].mxu0
    %v572 = vadd.f32 %v454, %v571
    %v573 = vpop.f32.mrb[0].mxu0
    %v574 = vpop.f32.mrb[0].mxu0
    %v575 = vadd.f32 %v454, %v574
    %v576 = vpop.f32.mrb[0].mxu0
    %577 = vmatprep.mubr.bf16.mxu0 0
    %578 = vmatmul.mubr.bf16.gmra.mrb[0].mxu0 %v488
    %v579 = vpop.f32.mrb[0].mxu0
    %v580 = vadd.f32 %v454, %v579
    %v581 = vpop.f32.mrb[0].mxu0
    %v582 = vpop.f32.mrb[0].mxu0
    %v583 = vadd.f32 %v454, %v582
    %v584 = vpop.f32.mrb[0].mxu0
    %585 = vmatprep.mubr.bf16.mxu0 0
    %586 = vmatmul.mubr.bf16.gmra.mrb[0].mxu0 %v491
    %v587 = vpop.f32.mrb[0].mxu0
    %v588 = vadd.f32 %v454, %v587
    %v589 = vpop.f32.mrb[0].mxu0
    %v590 = vpop.f32.mrb[0].mxu0
    %v591 = vadd.f32 %v454, %v590
    %v592 = vpop.f32.mrb[0].mxu0
    %593 = vmatprep.mubr.bf16.mxu0 0
    %594 = vmatmul.mubr.bf16.gmra.mrb[0].mxu0 %v494
    %v595 = vpop.f32.mrb[0].mxu0
    %v596 = vadd.f32 %v454, %v595
    %v597 = vpop.f32.mrb[0].mxu0
    %v598 = vpop.f32.mrb[0].mxu0
    %v599 = vadd.f32 %v454, %v598
    %v600 = vpop.f32.mrb[0].mxu0
    %601 = vmatprep.mubr.bf16.mxu0 0
    %602 = vmatmul.mubr.bf16.gmra.mrb[0].mxu0 %v497
    %v603 = vpop.f32.mrb[0].mxu0
    %v604 = vadd.f32 %v454, %v603
    %v605 = vpop.f32.mrb[0].mxu0
    %v606 = vpop.f32.mrb[0].mxu0
    %v607 = vadd.f32 %v454, %v606
    %v608 = vpop.f32.mrb[0].mxu0
    %609 = vmatprep.mubr.bf16.mxu0 0
    %610 = vmatmul.mubr.bf16.gmra.mrb[0].mxu0 %v500
    %v611 = vpop.f32.mrb[0].mxu0
    %v612 = vadd.f32 %v454, %v611
    %v613 = vpop.f32.mrb[0].mxu0
    %v614 = vpop.f32.mrb[0].mxu0
    %v615 = vadd.f32 %v454, %v614
    %v616 = vpop.f32.mrb[0].mxu0
    %617 = vmatprep.mubr.bf16.mxu0 0
    %618 = vmatmul.mubr.bf16.gmra.mrb[0].mxu0 %v503
    %v619 = vpop.f32.mrb[0].mxu0
    %v620 = vadd.f32 %v454, %v619
    %v621 = vpop.f32.mrb[0].mxu0
    %v622 = vpop.f32.mrb[0].mxu0
    %v623 = vadd.f32 %v454, %v622
    %v624 = vpop.f32.mrb[0].mxu0
    %625 = vmatprep.mubr.bf16.mxu0 0
    %626 = vmatmul.mubr.bf16.gmra.mrb[0].mxu0 %v506
    %v627 = vpop.f32.mrb[0].mxu0
    %v628 = vadd.f32 %v454, %v627
    %v629 = vpop.f32.mrb[0].mxu0
    %v630 = vpop.f32.mrb[0].mxu0
    %v631 = vadd.f32 %v454, %v630
    %v632 = vpop.f32.mrb[0].mxu0
    %633 = vmatprep.mubr.bf16.mxu0 0
    %634 = vmatmul.mubr.bf16.gmra.mrb[0].mxu0 %v509
    %v635 = vpop.f32.mrb[0].mxu0
    %v636 = vadd.f32 %v454, %v635
    %v637 = vpop.f32.mrb[0].mxu0
    %v638 = vpop.f32.mrb[0].mxu0
    %v639 = vadd.f32 %v454, %v638
    %v640 = vpop.f32.mrb[0].mxu0
    %641 = vmatprep.mubr.bf16.mxu0 0
    %642 = vmatmul.mubr.bf16.gmra.mrb[0].mxu0 %v512
    %v643 = vpop.f32.mrb[0].mxu0
    %v644 = vadd.f32 %v454, %v643
    %v645 = vpop.f32.mrb[0].mxu0
    %v646 = vpop.f32.mrb[0].mxu0
    %v647 = vadd.f32 %v454, %v646
    %v648 = vpop.f32.mrb[0].mxu0
    %649 = vmatprep.mubr.bf16.mxu0 0
    %650 = vmatmul.mubr.bf16.gmra.mrb[0].mxu0 %v515
    %v651 = vpop.f32.mrb[0].mxu0
    %v652 = vadd.f32 %v454, %v651
    %v653 = vpop.f32.mrb[0].mxu0
    %v654 = vpop.f32.mrb[0].mxu0
    %v655 = vadd.f32 %v454, %v654
    %v656 = vpop.f32.mrb[0].mxu0
    %657 = vmatprep.mubr.bf16.mxu0 0
    %658 = vmatmul.mubr.bf16.gmra.mrb[0].mxu0 %v518
    %v659 = vpop.f32.mrb[0].mxu0
    %v660 = vadd.f32 %v454, %v659
    %v661 = vpop.f32.mrb[0].mxu0
    %v662 = vpop.f32.mrb[0].mxu0
    %v663 = vadd.f32 %v454, %v662
    %v664 = vpop.f32.mrb[0].mxu0
    %665 = vmatprep.mubr.bf16.mxu0 0
    %666 = vmatmul.mubr.bf16.gmra.mrb[0].mxu0 %v521
    %v667 = vpop.f32.mrb[0].mxu0
    %v668 = vadd.f32 %v454, %v667
    %v669 = vpop.f32.mrb[0].mxu0
    %v670 = vpop.f32.mrb[0].mxu0
    %v671 = vadd.f32 %v454, %v670
    %v672 = vpop.f32.mrb[0].mxu0
    %673 = vmatprep.mubr.bf16.mxu0 0
    %674 = vmatmul.mubr.bf16.gmra.mrb[0].mxu0 %v524
    %v675 = vpop.f32.mrb[0].mxu0
    %v676 = vadd.f32 %v454, %v675
    %v677 = vpop.f32.mrb[0].mxu0
    %v678 = vpop.f32.mrb[0].mxu0
    %v679 = vadd.f32 %v454, %v678
    %v680 = vpop.f32.mrb[0].mxu0
    %681 = vmatprep.mubr.bf16.mxu0 0
    %682 = vmatmul.mubr.bf16.gmra.mrb[0].mxu0 %v527
    %v683 = vpop.f32.mrb[0].mxu0
    %v684 = vadd.f32 %v454, %v683
    %v685 = vpop.f32.mrb[0].mxu0
    %v686 = vpop.f32.mrb[0].mxu0
    %v687 = vadd.f32 %v454, %v686
    %v688 = vpop.f32.mrb[0].mxu0
    %689 = vdwg.mxu0
    %v690 = vmax.f32 %v564, 0.0
    %v691 = vmax.f32 %v567, 0.0
    %v692 = vmax.f32 %v572, 0.0
    %v693 = vmax.f32 %v575, 0.0
    %v694 = vmax.f32 %v580, 0.0
    %v695 = vmax.f32 %v583, 0.0
    %v696 = vmax.f32 %v588, 0.0
    %v697 = vmax.f32 %v591, 0.0
    %v698 = vmax.f32 %v596, 0.0
    %v699 = vmax.f32 %v599, 0.0
    %v700 = vmax.f32 %v604, 0.0
    %v701 = vmax.f32 %v607, 0.0
    %v702 = vmax.f32 %v612, 0.0
    %v703 = vmax.f32 %v615, 0.0
    %v704 = vmax.f32 %v620, 0.0
    %v705 = vmax.f32 %v623, 0.0
    %v706 = vmax.f32 %v628, 0.0
    %v707 = vmax.f32 %v631, 0.0
    %v708 = vmax.f32 %v636, 0.0
    %v709 = vmax.f32 %v639, 0.0
    %v710 = vmax.f32 %v644, 0.0
    %v711 = vmax.f32 %v647, 0.0
    %v712 = vmax.f32 %v652, 0.0
    %v713 = vmax.f32 %v655, 0.0
    %v714 = vmax.f32 %v660, 0.0
    %v715 = vmax.f32 %v663, 0.0
    %v716 = vmax.f32 %v668, 0.0
    %v717 = vmax.f32 %v671, 0.0
    %v718 = vmax.f32 %v676, 0.0
    %v719 = vmax.f32 %v679, 0.0
    %v720 = vmax.f32 %v684, 0.0
    %v721 = vmax.f32 %v687, 0.0
    %v722 = vpack.c.bf16 %v691, %v690
    %v723 = vpack.c.bf16 %v693, %v692
    %v724 = vpack.c.bf16 %v695, %v694
    %v725 = vpack.c.bf16 %v697, %v696
    %v726 = vpack.c.bf16 %v699, %v698
    %v727 = vpack.c.bf16 %v701, %v700
    %v728 = vpack.c.bf16 %v703, %v702
    %v729 = vpack.c.bf16 %v705, %v704
    %v730 = vpack.c.bf16 %v707, %v706
    %v731 = vpack.c.bf16 %v709, %v708
    %v732 = vpack.c.bf16 %v711, %v710
    %v733 = vpack.c.bf16 %v713, %v712
    %v734 = vpack.c.bf16 %v715, %v714
    %v735 = vpack.c.bf16 %v717, %v716
    %v736 = vpack.c.bf16 %v719, %v718
    %v737 = vpack.c.bf16 %v721, %v720
    %v738 = vld [vmem:[%s5] sm:$0xff]
    %v739 = vld [vmem:[%s5 + $0x8] sm:$0xff]
    %v740 = vld [vmem:[%s5 + $0x10] sm:$0xff]
    %v741 = vld [vmem:[%s5 + $0x18] sm:$0xff]
    %v742 = vld [vmem:[%s5 + $0x20] sm:$0xff]
    %v743 = vld [vmem:[%s5 + $0x28] sm:$0xff]
    %v744 = vld [vmem:[%s5 + $0x30] sm:$0xff]
    %v745 = vld [vmem:[%s5 + $0x38] sm:$0xff]
    %v746 = vld [vmem:[%s5 + $0x40] sm:$0xff]
    %v747 = vld [vmem:[%s5 + $0x48] sm:$0xff]
    %v748 = vld [vmem:[%s5 + $0x50] sm:$0xff]
    %v749 = vld [vmem:[%s5 + $0x58] sm:$0xff]
    %v750 = vld [vmem:[%s6] sm:$0x3f]
    %v752 = vlaneseq
    %v753 = vshrl.u32 %v752, 7
    %v754 = vsub.s32 0, %v753
    %v755 = vrot.slane %v750, %v754
    %v756 = vlaneseq
    %v757 = vshrl.u32 %v756, 7
    %v758 = vsub.s32 1, %v757
    %v759 = vrot.slane %v750, %v758
    %v760 = vlaneseq
    %v761 = vshrl.u32 %v760, 7
    %v762 = vsub.s32 2, %v761
    %v763 = vrot.slane %v750, %v762
    %v764 = vlaneseq
    %v765 = vshrl.u32 %v764, 7
    %v766 = vsub.s32 3, %v765
    %v767 = vrot.slane %v750, %v766
    %v768 = vlaneseq
    %v769 = vshrl.u32 %v768, 7
    %v770 = vsub.s32 4, %v769
    %v771 = vrot.slane %v750, %v770
    %v772 = vlaneseq
    %v773 = vshrl.u32 %v772, 7
    %v774 = vsub.s32 5, %v773
    %v775 = vrot.slane %v750, %v774
    %v794 = vunpack.c.l.b16 %v738
    %v795 = vunpack.c.h.b16 %v738
    %v796 = vunpack.c.l.b16 %v739
    %v797 = vunpack.c.h.b16 %v739
    %v798 = vunpack.c.l.b16 %v740
    %v799 = vunpack.c.h.b16 %v740
    %v800 = vunpack.c.l.b16 %v741
    %v801 = vunpack.c.h.b16 %v741
    %v802 = vunpack.c.l.b16 %v742
    %v803 = vunpack.c.h.b16 %v742
    %v804 = vunpack.c.l.b16 %v743
    %v805 = vunpack.c.h.b16 %v743
    %v806 = vunpack.c.l.b16 %v744
    %v807 = vunpack.c.h.b16 %v744
    %v808 = vunpack.c.l.b16 %v745
    %v809 = vunpack.c.h.b16 %v745
    %v810 = vunpack.c.l.b16 %v746
    %v811 = vunpack.c.h.b16 %v746
    %v812 = vunpack.c.l.b16 %v747
    %v813 = vunpack.c.h.b16 %v747
    %v814 = vunpack.c.l.b16 %v748
    %v815 = vunpack.c.h.b16 %v748
    %v816 = vunpack.c.l.b16 %v749
    %v817 = vunpack.c.h.b16 %v749
    %v818 = vpack.c.b16 %v800, %v794
    %v819 = vpack.c.b16 %v801, %v795
    %v820 = vpack.c.b16 %v802, %v796
    %v821 = vpack.c.b16 %v803, %v797
    %v822 = vpack.c.b16 %v804, %v798
    %v823 = vpack.c.b16 %v805, %v799
    %v824 = vpack.c.b16 %v812, %v806
    %v825 = vpack.c.b16 %v813, %v807
    %v826 = vpack.c.b16 %v814, %v808
    %v827 = vpack.c.b16 %v815, %v809
    %v828 = vpack.c.b16 %v816, %v810
    %v829 = vpack.c.b16 %v817, %v811
    %v843 = vsel %vm183, %v722, 0
    %v846 = vsel %vm183, %v723, 0
    %v849 = vsel %vm183, %v724, 0
    %v852 = vsel %vm183, %v725, 0
    %v855 = vsel %vm183, %v726, 0
    %v858 = vsel %vm183, %v727, 0
    %v861 = vsel %vm183, %v728, 0
    %v864 = vsel %vm183, %v729, 0
    %v867 = vsel %vm183, %v730, 0
    %v870 = vsel %vm183, %v731, 0
    %v873 = vsel %vm183, %v732, 0
    %v876 = vsel %vm183, %v733, 0
    %v879 = vsel %vm183, %v734, 0
    %v882 = vsel %vm183, %v735, 0
    %v885 = vsel %vm183, %v736, 0
    %v888 = vsel %vm183, %v737, 0
    %890 = vmatprep.subr.bf16.mxu0 %v819
    %891 = vmatpush1.bf16.msra.mxu0 %v818
    %892 = vmatprep.subr.bf16.mxu0 %v825
    %893 = vmatpush1.bf16.msra.mxu0 %v824
    %894 = vmatprep.subr.bf16.mxu0 0
    %895 = vmatpush1.bf16.msra.mxu0 0
    %896 = vmatprep.subr.bf16.mxu0 0
    %897 = vmatpush1.bf16.msra.mxu0 0
    %898 = vmatprep.subr.bf16.mxu0 0
    %899 = vmatpush1.bf16.msra.mxu0 0
    %900 = vmatprep.subr.bf16.mxu0 0
    %901 = vmatpush1.bf16.msra.mxu0 0
    %902 = vmatprep.subr.bf16.mxu0 0
    %903 = vmatpush1.bf16.msra.mxu0 0
    %904 = vmatprep.subr.bf16.mxu0 0
    %905 = vmatpush1.bf16.msra.mxu0 0
    %906 = vmatprep.subr.bf16.mxu0 0
    %907 = vmatpush1.bf16.msra.mxu0 0
    %908 = vmatprep.subr.bf16.mxu0 0
    %909 = vmatpush1.bf16.msra.mxu0 0
    %910 = vmatprep.subr.bf16.mxu0 0
    %911 = vmatpush1.bf16.msra.mxu0 0
    %912 = vmatprep.subr.bf16.mxu0 0
    %913 = vmatpush1.bf16.msra.mxu0 0
    %914 = vmatprep.subr.bf16.mxu0 0
    %915 = vmatpush1.bf16.msra.mxu0 0
    %916 = vmatprep.subr.bf16.mxu0 0
    %917 = vmatpush1.bf16.msra.mxu0 0
    %918 = vmatprep.subr.bf16.mxu0 0
    %919 = vmatpush1.bf16.msra.mxu0 0
    %920 = vmatprep.subr.bf16.mxu0 0
    %921 = vmatpush1.bf16.msra.mxu0 0
    %922 = vmatprep.mubr.bf16.mxu0 0
    %923 = vmatmul.mubr.bf16.gmra.mrb[0].mxu0 %v843
    %v924 = vpop.f32.mrb[0].mxu0
    %v925 = vadd.f32 %v755, %v924
    %v926 = vpop.f32.mrb[0].mxu0
    %v927 = vadd.f32 %v759, %v926
    %v928 = vpop.f32.mrb[0].mxu0
    %v929 = vadd.f32 %v755, %v928
    %v930 = vpop.f32.mrb[0].mxu0
    %v931 = vadd.f32 %v759, %v930
    %932 = vmatprep.mubr.bf16.mxu0 0
    %933 = vmatmul.mubr.bf16.gmra.mrb[0].mxu0 %v846
    %v934 = vpop.f32.mrb[0].mxu0
    %v935 = vadd.f32 %v755, %v934
    %v936 = vpop.f32.mrb[0].mxu0
    %v937 = vadd.f32 %v759, %v936
    %v938 = vpop.f32.mrb[0].mxu0
    %v939 = vadd.f32 %v755, %v938
    %v940 = vpop.f32.mrb[0].mxu0
    %v941 = vadd.f32 %v759, %v940
    %942 = vmatprep.mubr.bf16.mxu0 0
    %943 = vmatmul.mubr.bf16.gmra.mrb[0].mxu0 %v849
    %v944 = vpop.f32.mrb[0].mxu0
    %v945 = vadd.f32 %v755, %v944
    %v946 = vpop.f32.mrb[0].mxu0
    %v947 = vadd.f32 %v759, %v946
    %v948 = vpop.f32.mrb[0].mxu0
    %v949 = vadd.f32 %v755, %v948
    %v950 = vpop.f32.mrb[0].mxu0
    %v951 = vadd.f32 %v759, %v950
    %952 = vmatprep.mubr.bf16.mxu0 0
    %953 = vmatmul.mubr.bf16.gmra.mrb[0].mxu0 %v852
    %v954 = vpop.f32.mrb[0].mxu0
    %v955 = vadd.f32 %v755, %v954
    %v956 = vpop.f32.mrb[0].mxu0
    %v957 = vadd.f32 %v759, %v956
    %v958 = vpop.f32.mrb[0].mxu0
    %v959 = vadd.f32 %v755, %v958
    %v960 = vpop.f32.mrb[0].mxu0
    %v961 = vadd.f32 %v759, %v960
    %962 = vmatprep.mubr.bf16.mxu0 0
    %963 = vmatmul.mubr.bf16.gmra.mrb[0].mxu0 %v855
    %v964 = vpop.f32.mrb[0].mxu0
    %v965 = vadd.f32 %v755, %v964
    %v966 = vpop.f32.mrb[0].mxu0
    %v967 = vadd.f32 %v759, %v966
    %v968 = vpop.f32.mrb[0].mxu0
    %v969 = vadd.f32 %v755, %v968
    %v970 = vpop.f32.mrb[0].mxu0
    %v971 = vadd.f32 %v759, %v970
    %972 = vmatprep.mubr.bf16.mxu0 0
    %973 = vmatmul.mubr.bf16.gmra.mrb[0].mxu0 %v858
    %v974 = vpop.f32.mrb[0].mxu0
    %v975 = vadd.f32 %v755, %v974
    %v976 = vpop.f32.mrb[0].mxu0
    %v977 = vadd.f32 %v759, %v976
    %v978 = vpop.f32.mrb[0].mxu0
    %v979 = vadd.f32 %v755, %v978
    %v980 = vpop.f32.mrb[0].mxu0
    %v981 = vadd.f32 %v759, %v980
    %982 = vmatprep.mubr.bf16.mxu0 0
    %983 = vmatmul.mubr.bf16.gmra.mrb[0].mxu0 %v861
    %v984 = vpop.f32.mrb[0].mxu0
    %v985 = vadd.f32 %v755, %v984
    %v986 = vpop.f32.mrb[0].mxu0
    %v987 = vadd.f32 %v759, %v986
    %v988 = vpop.f32.mrb[0].mxu0
    %v989 = vadd.f32 %v755, %v988
    %v990 = vpop.f32.mrb[0].mxu0
    %v991 = vadd.f32 %v759, %v990
    %992 = vmatprep.mubr.bf16.mxu0 0
    %993 = vmatmul.mubr.bf16.gmra.mrb[0].mxu0 %v864
    %v994 = vpop.f32.mrb[0].mxu0
    %v995 = vadd.f32 %v755, %v994
    %v996 = vpop.f32.mrb[0].mxu0
    %v997 = vadd.f32 %v759, %v996
    %v998 = vpop.f32.mrb[0].mxu0
    %v999 = vadd.f32 %v755, %v998
    %v1000 = vpop.f32.mrb[0].mxu0
    %v1001 = vadd.f32 %v759, %v1000
    %1002 = vmatprep.mubr.bf16.mxu0 0
    %1003 = vmatmul.mubr.bf16.gmra.mrb[0].mxu0 %v867
    %v1004 = vpop.f32.mrb[0].mxu0
    %v1005 = vadd.f32 %v755, %v1004
    %v1006 = vpop.f32.mrb[0].mxu0
    %v1007 = vadd.f32 %v759, %v1006
    %v1008 = vpop.f32.mrb[0].mxu0
    %v1009 = vadd.f32 %v755, %v1008
    %v1010 = vpop.f32.mrb[0].mxu0
    %v1011 = vadd.f32 %v759, %v1010
    %1012 = vmatprep.mubr.bf16.mxu0 0
    %1013 = vmatmul.mubr.bf16.gmra.mrb[0].mxu0 %v870
    %v1014 = vpop.f32.mrb[0].mxu0
    %v1015 = vadd.f32 %v755, %v1014
    %v1016 = vpop.f32.mrb[0].mxu0
    %v1017 = vadd.f32 %v759, %v1016
    %v1018 = vpop.f32.mrb[0].mxu0
    %v1019 = vadd.f32 %v755, %v1018
    %v1020 = vpop.f32.mrb[0].mxu0
    %v1021 = vadd.f32 %v759, %v1020
    %1022 = vmatprep.mubr.bf16.mxu0 0
    %1023 = vmatmul.mubr.bf16.gmra.mrb[0].mxu0 %v873
    %v1024 = vpop.f32.mrb[0].mxu0
    %v1025 = vadd.f32 %v755, %v1024
    %v1026 = vpop.f32.mrb[0].mxu0
    %v1027 = vadd.f32 %v759, %v1026
    %v1028 = vpop.f32.mrb[0].mxu0
    %v1029 = vadd.f32 %v755, %v1028
    %v1030 = vpop.f32.mrb[0].mxu0
    %v1031 = vadd.f32 %v759, %v1030
    %1032 = vmatprep.mubr.bf16.mxu0 0
    %1033 = vmatmul.mubr.bf16.gmra.mrb[0].mxu0 %v876
    %v1034 = vpop.f32.mrb[0].mxu0
    %v1035 = vadd.f32 %v755, %v1034
    %v1036 = vpop.f32.mrb[0].mxu0
    %v1037 = vadd.f32 %v759, %v1036
    %v1038 = vpop.f32.mrb[0].mxu0
    %v1039 = vadd.f32 %v755, %v1038
    %v1040 = vpop.f32.mrb[0].mxu0
    %v1041 = vadd.f32 %v759, %v1040
    %1042 = vmatprep.mubr.bf16.mxu0 0
    %1043 = vmatmul.mubr.bf16.gmra.mrb[0].mxu0 %v879
    %v1044 = vpop.f32.mrb[0].mxu0
    %v1045 = vadd.f32 %v755, %v1044
    %v1046 = vpop.f32.mrb[0].mxu0
    %v1047 = vadd.f32 %v759, %v1046
    %v1048 = vpop.f32.mrb[0].mxu0
    %v1049 = vadd.f32 %v755, %v1048
    %v1050 = vpop.f32.mrb[0].mxu0
    %v1051 = vadd.f32 %v759, %v1050
    %1052 = vmatprep.mubr.bf16.mxu0 0
    %1053 = vmatmul.mubr.bf16.gmra.mrb[0].mxu0 %v882
    %v1054 = vpop.f32.mrb[0].mxu0
    %v1055 = vadd.f32 %v755, %v1054
    %v1056 = vpop.f32.mrb[0].mxu0
    %v1057 = vadd.f32 %v759, %v1056
    %v1058 = vpop.f32.mrb[0].mxu0
    %v1059 = vadd.f32 %v755, %v1058
    %v1060 = vpop.f32.mrb[0].mxu0
    %v1061 = vadd.f32 %v759, %v1060
    %1062 = vmatprep.mubr.bf16.mxu0 0
    %1063 = vmatmul.mubr.bf16.gmra.mrb[0].mxu0 %v885
    %v1064 = vpop.f32.mrb[0].mxu0
    %v1065 = vadd.f32 %v755, %v1064
    %v1066 = vpop.f32.mrb[0].mxu0
    %v1067 = vadd.f32 %v759, %v1066
    %v1068 = vpop.f32.mrb[0].mxu0
    %v1069 = vadd.f32 %v755, %v1068
    %v1070 = vpop.f32.mrb[0].mxu0
    %v1071 = vadd.f32 %v759, %v1070
    %1072 = vmatprep.mubr.bf16.mxu0 0
    %1073 = vmatmul.mubr.bf16.gmra.mrb[0].mxu0 %v888
    %v1074 = vpop.f32.mrb[0].mxu0
    %v1075 = vadd.f32 %v755, %v1074
    %v1076 = vpop.f32.mrb[0].mxu0
    %v1077 = vadd.f32 %v759, %v1076
    %v1078 = vpop.f32.mrb[0].mxu0
    %v1079 = vadd.f32 %v755, %v1078
    %v1080 = vpop.f32.mrb[0].mxu0
    %v1081 = vadd.f32 %v759, %v1080
    %1082 = vdwg.mxu0
    %1083 = vmatprep.subr.bf16.mxu0 %v821
    %1084 = vmatpush1.bf16.msra.mxu0 %v820
    %1085 = vmatprep.subr.bf16.mxu0 %v827
    %1086 = vmatpush1.bf16.msra.mxu0 %v826
    %1087 = vmatprep.subr.bf16.mxu0 0
    %1088 = vmatpush1.bf16.msra.mxu0 0
    %1089 = vmatprep.subr.bf16.mxu0 0
    %1090 = vmatpush1.bf16.msra.mxu0 0
    %1091 = vmatprep.subr.bf16.mxu0 0
    %1092 = vmatpush1.bf16.msra.mxu0 0
    %1093 = vmatprep.subr.bf16.mxu0 0
    %1094 = vmatpush1.bf16.msra.mxu0 0
    %1095 = vmatprep.subr.bf16.mxu0 0
    %1096 = vmatpush1.bf16.msra.mxu0 0
    %1097 = vmatprep.subr.bf16.mxu0 0
    %1098 = vmatpush1.bf16.msra.mxu0 0
    %1099 = vmatprep.subr.bf16.mxu0 0
    %1100 = vmatpush1.bf16.msra.mxu0 0
    %1101 = vmatprep.subr.bf16.mxu0 0
    %1102 = vmatpush1.bf16.msra.mxu0 0
    %1103 = vmatprep.subr.bf16.mxu0 0
    %1104 = vmatpush1.bf16.msra.mxu0 0
    %1105 = vmatprep.subr.bf16.mxu0 0
    %1106 = vmatpush1.bf16.msra.mxu0 0
    %1107 = vmatprep.subr.bf16.mxu0 0
    %1108 = vmatpush1.bf16.msra.mxu0 0
    %1109 = vmatprep.subr.bf16.mxu0 0
    %1110 = vmatpush1.bf16.msra.mxu0 0
    %1111 = vmatprep.subr.bf16.mxu0 0
    %1112 = vmatpush1.bf16.msra.mxu0 0
    %1113 = vmatprep.subr.bf16.mxu0 0
    %1114 = vmatpush1.bf16.msra.mxu0 0
    %1115 = vmatprep.mubr.bf16.mxu0 0
    %1116 = vmatmul.mubr.bf16.gmra.mrb[0].mxu0 %v843
    %v1117 = vpop.f32.mrb[0].mxu0
    %v1118 = vadd.f32 %v763, %v1117
    %v1119 = vpop.f32.mrb[0].mxu0
    %v1120 = vadd.f32 %v767, %v1119
    %v1121 = vpop.f32.mrb[0].mxu0
    %v1122 = vadd.f32 %v763, %v1121
    %v1123 = vpop.f32.mrb[0].mxu0
    %v1124 = vadd.f32 %v767, %v1123
    %1125 = vmatprep.mubr.bf16.mxu0 0
    %1126 = vmatmul.mubr.bf16.gmra.mrb[0].mxu0 %v846
    %v1127 = vpop.f32.mrb[0].mxu0
    %v1128 = vadd.f32 %v763, %v1127
    %v1129 = vpop.f32.mrb[0].mxu0
    %v1130 = vadd.f32 %v767, %v1129
    %v1131 = vpop.f32.mrb[0].mxu0
    %v1132 = vadd.f32 %v763, %v1131
    %v1133 = vpop.f32.mrb[0].mxu0
    %v1134 = vadd.f32 %v767, %v1133
    %1135 = vmatprep.mubr.bf16.mxu0 0
    %1136 = vmatmul.mubr.bf16.gmra.mrb[0].mxu0 %v849
    %v1137 = vpop.f32.mrb[0].mxu0
    %v1138 = vadd.f32 %v763, %v1137
    %v1139 = vpop.f32.mrb[0].mxu0
    %v1140 = vadd.f32 %v767, %v1139
    %v1141 = vpop.f32.mrb[0].mxu0
    %v1142 = vadd.f32 %v763, %v1141
    %v1143 = vpop.f32.mrb[0].mxu0
    %v1144 = vadd.f32 %v767, %v1143
    %1145 = vmatprep.mubr.bf16.mxu0 0
    %1146 = vmatmul.mubr.bf16.gmra.mrb[0].mxu0 %v852
    %v1147 = vpop.f32.mrb[0].mxu0
    %v1148 = vadd.f32 %v763, %v1147
    %v1149 = vpop.f32.mrb[0].mxu0
    %v1150 = vadd.f32 %v767, %v1149
    %v1151 = vpop.f32.mrb[0].mxu0
    %v1152 = vadd.f32 %v763, %v1151
    %v1153 = vpop.f32.mrb[0].mxu0
    %v1154 = vadd.f32 %v767, %v1153
    %1155 = vmatprep.mubr.bf16.mxu0 0
    %1156 = vmatmul.mubr.bf16.gmra.mrb[0].mxu0 %v855
    %v1157 = vpop.f32.mrb[0].mxu0
    %v1158 = vadd.f32 %v763, %v1157
    %v1159 = vpop.f32.mrb[0].mxu0
    %v1160 = vadd.f32 %v767, %v1159
    %v1161 = vpop.f32.mrb[0].mxu0
    %v1162 = vadd.f32 %v763, %v1161
    %v1163 = vpop.f32.mrb[0].mxu0
    %v1164 = vadd.f32 %v767, %v1163
    %1165 = vmatprep.mubr.bf16.mxu0 0
    %1166 = vmatmul.mubr.bf16.gmra.mrb[0].mxu0 %v858
    %v1167 = vpop.f32.mrb[0].mxu0
    %v1168 = vadd.f32 %v763, %v1167
    %v1169 = vpop.f32.mrb[0].mxu0
    %v1170 = vadd.f32 %v767, %v1169
    %v1171 = vpop.f32.mrb[0].mxu0
    %v1172 = vadd.f32 %v763, %v1171
    %v1173 = vpop.f32.mrb[0].mxu0
    %v1174 = vadd.f32 %v767, %v1173
    %1175 = vmatprep.mubr.bf16.mxu0 0
    %1176 = vmatmul.mubr.bf16.gmra.mrb[0].mxu0 %v861
    %v1177 = vpop.f32.mrb[0].mxu0
    %v1178 = vadd.f32 %v763, %v1177
    %v1179 = vpop.f32.mrb[0].mxu0
    %v1180 = vadd.f32 %v767, %v1179
    %v1181 = vpop.f32.mrb[0].mxu0
    %v1182 = vadd.f32 %v763, %v1181
    %v1183 = vpop.f32.mrb[0].mxu0
    %v1184 = vadd.f32 %v767, %v1183
    %1185 = vmatprep.mubr.bf16.mxu0 0
    %1186 = vmatmul.mubr.bf16.gmra.mrb[0].mxu0 %v864
    %v1187 = vpop.f32.mrb[0].mxu0
    %v1188 = vadd.f32 %v763, %v1187
    %v1189 = vpop.f32.mrb[0].mxu0
    %v1190 = vadd.f32 %v767, %v1189
    %v1191 = vpop.f32.mrb[0].mxu0
    %v1192 = vadd.f32 %v763, %v1191
    %v1193 = vpop.f32.mrb[0].mxu0
    %v1194 = vadd.f32 %v767, %v1193
    %1195 = vmatprep.mubr.bf16.mxu0 0
    %1196 = vmatmul.mubr.bf16.gmra.mrb[0].mxu0 %v867
    %v1197 = vpop.f32.mrb[0].mxu0
    %v1198 = vadd.f32 %v763, %v1197
    %v1199 = vpop.f32.mrb[0].mxu0
    %v1200 = vadd.f32 %v767, %v1199
    %v1201 = vpop.f32.mrb[0].mxu0
    %v1202 = vadd.f32 %v763, %v1201
    %v1203 = vpop.f32.mrb[0].mxu0
    %v1204 = vadd.f32 %v767, %v1203
    %1205 = vmatprep.mubr.bf16.mxu0 0
    %1206 = vmatmul.mubr.bf16.gmra.mrb[0].mxu0 %v870
    %v1207 = vpop.f32.mrb[0].mxu0
    %v1208 = vadd.f32 %v763, %v1207
    %v1209 = vpop.f32.mrb[0].mxu0
    %v1210 = vadd.f32 %v767, %v1209
    %v1211 = vpop.f32.mrb[0].mxu0
    %v1212 = vadd.f32 %v763, %v1211
    %v1213 = vpop.f32.mrb[0].mxu0
    %v1214 = vadd.f32 %v767, %v1213
    %1215 = vmatprep.mubr.bf16.mxu0 0
    %1216 = vmatmul.mubr.bf16.gmra.mrb[0].mxu0 %v873
    %v1217 = vpop.f32.mrb[0].mxu0
    %v1218 = vadd.f32 %v763, %v1217
    %v1219 = vpop.f32.mrb[0].mxu0
    %v1220 = vadd.f32 %v767, %v1219
    %v1221 = vpop.f32.mrb[0].mxu0
    %v1222 = vadd.f32 %v763, %v1221
    %v1223 = vpop.f32.mrb[0].mxu0
    %v1224 = vadd.f32 %v767, %v1223
    %1225 = vmatprep.mubr.bf16.mxu0 0
    %1226 = vmatmul.mubr.bf16.gmra.mrb[0].mxu0 %v876
    %v1227 = vpop.f32.mrb[0].mxu0
    %v1228 = vadd.f32 %v763, %v1227
    %v1229 = vpop.f32.mrb[0].mxu0
    %v1230 = vadd.f32 %v767, %v1229
    %v1231 = vpop.f32.mrb[0].mxu0
    %v1232 = vadd.f32 %v763, %v1231
    %v1233 = vpop.f32.mrb[0].mxu0
    %v1234 = vadd.f32 %v767, %v1233
    %1235 = vmatprep.mubr.bf16.mxu0 0
    %1236 = vmatmul.mubr.bf16.gmra.mrb[0].mxu0 %v879
    %v1237 = vpop.f32.mrb[0].mxu0
    %v1238 = vadd.f32 %v763, %v1237
    %v1239 = vpop.f32.mrb[0].mxu0
    %v1240 = vadd.f32 %v767, %v1239
    %v1241 = vpop.f32.mrb[0].mxu0
    %v1242 = vadd.f32 %v763, %v1241
    %v1243 = vpop.f32.mrb[0].mxu0
    %v1244 = vadd.f32 %v767, %v1243
    %1245 = vmatprep.mubr.bf16.mxu0 0
    %1246 = vmatmul.mubr.bf16.gmra.mrb[0].mxu0 %v882
    %v1247 = vpop.f32.mrb[0].mxu0
    %v1248 = vadd.f32 %v763, %v1247
    %v1249 = vpop.f32.mrb[0].mxu0
    %v1250 = vadd.f32 %v767, %v1249
    %v1251 = vpop.f32.mrb[0].mxu0
    %v1252 = vadd.f32 %v763, %v1251
    %v1253 = vpop.f32.mrb[0].mxu0
    %v1254 = vadd.f32 %v767, %v1253
    %1255 = vmatprep.mubr.bf16.mxu0 0
    %1256 = vmatmul.mubr.bf16.gmra.mrb[0].mxu0 %v885
    %v1257 = vpop.f32.mrb[0].mxu0
    %v1258 = vadd.f32 %v763, %v1257
    %v1259 = vpop.f32.mrb[0].mxu0
    %v1260 = vadd.f32 %v767, %v1259
    %v1261 = vpop.f32.mrb[0].mxu0
    %v1262 = vadd.f32 %v763, %v1261
    %v1263 = vpop.f32.mrb[0].mxu0
    %v1264 = vadd.f32 %v767, %v1263
    %1265 = vmatprep.mubr.bf16.mxu0 0
    %1266 = vmatmul.mubr.bf16.gmra.mrb[0].mxu0 %v888
    %v1267 = vpop.f32.mrb[0].mxu0
    %v1268 = vadd.f32 %v763, %v1267
    %v1269 = vpop.f32.mrb[0].mxu0
    %v1270 = vadd.f32 %v767, %v1269
    %v1271 = vpop.f32.mrb[0].mxu0
    %v1272 = vadd.f32 %v763, %v1271
    %v1273 = vpop.f32.mrb[0].mxu0
    %v1274 = vadd.f32 %v767, %v1273
    %1275 = vdwg.mxu0
    %1276 = vmatprep.subr.bf16.mxu0 %v823
    %1277 = vmatpush1.bf16.msra.mxu0 %v822
    %1278 = vmatprep.subr.bf16.mxu0 %v829
    %1279 = vmatpush1.bf16.msra.mxu0 %v828
    %1280 = vmatprep.subr.bf16.mxu0 0
    %1281 = vmatpush1.bf16.msra.mxu0 0
    %1282 = vmatprep.subr.bf16.mxu0 0
    %1283 = vmatpush1.bf16.msra.mxu0 0
    %1284 = vmatprep.subr.bf16.mxu0 0
    %1285 = vmatpush1.bf16.msra.mxu0 0
    %1286 = vmatprep.subr.bf16.mxu0 0
    %1287 = vmatpush1.bf16.msra.mxu0 0
    %1288 = vmatprep.subr.bf16.mxu0 0
    %1289 = vmatpush1.bf16.msra.mxu0 0
    %1290 = vmatprep.subr.bf16.mxu0 0
    %1291 = vmatpush1.bf16.msra.mxu0 0
    %1292 = vmatprep.subr.bf16.mxu0 0
    %1293 = vmatpush1.bf16.msra.mxu0 0
    %1294 = vmatprep.subr.bf16.mxu0 0
    %1295 = vmatpush1.bf16.msra.mxu0 0
    %1296 = vmatprep.subr.bf16.mxu0 0
    %1297 = vmatpush1.bf16.msra.mxu0 0
    %1298 = vmatprep.subr.bf16.mxu0 0
    %1299 = vmatpush1.bf16.msra.mxu0 0
    %1300 = vmatprep.subr.bf16.mxu0 0
    %1301 = vmatpush1.bf16.msra.mxu0 0
    %1302 = vmatprep.subr.bf16.mxu0 0
    %1303 = vmatpush1.bf16.msra.mxu0 0
    %1304 = vmatprep.subr.bf16.mxu0 0
    %1305 = vmatpush1.bf16.msra.mxu0 0
    %1306 = vmatprep.subr.bf16.mxu0 0
    %1307 = vmatpush1.bf16.msra.mxu0 0
    %1308 = vmatprep.mubr.bf16.mxu0 0
    %1309 = vmatmul.mubr.bf16.gmra.mrb[0].mxu0 %v843
    %v1310 = vpop.f32.mrb[0].mxu0
    %v1311 = vadd.f32 %v771, %v1310
    %v1312 = vpop.f32.mrb[0].mxu0
    %v1313 = vadd.f32 %v775, %v1312
    %v1314 = vpop.f32.mrb[0].mxu0
    %v1315 = vadd.f32 %v771, %v1314
    %v1316 = vpop.f32.mrb[0].mxu0
    %v1317 = vadd.f32 %v775, %v1316
    %1318 = vmatprep.mubr.bf16.mxu0 0
    %1319 = vmatmul.mubr.bf16.gmra.mrb[0].mxu0 %v846
    %v1320 = vpop.f32.mrb[0].mxu0
    %v1321 = vadd.f32 %v771, %v1320
    %v1322 = vpop.f32.mrb[0].mxu0
    %v1323 = vadd.f32 %v775, %v1322
    %v1324 = vpop.f32.mrb[0].mxu0
    %v1325 = vadd.f32 %v771, %v1324
    %v1326 = vpop.f32.mrb[0].mxu0
    %v1327 = vadd.f32 %v775, %v1326
    %1328 = vmatprep.mubr.bf16.mxu0 0
    %1329 = vmatmul.mubr.bf16.gmra.mrb[0].mxu0 %v849
    %v1330 = vpop.f32.mrb[0].mxu0
    %v1331 = vadd.f32 %v771, %v1330
    %v1332 = vpop.f32.mrb[0].mxu0
    %v1333 = vadd.f32 %v775, %v1332
    %v1334 = vpop.f32.mrb[0].mxu0
    %v1335 = vadd.f32 %v771, %v1334
    %v1336 = vpop.f32.mrb[0].mxu0
    %v1337 = vadd.f32 %v775, %v1336
    %1338 = vmatprep.mubr.bf16.mxu0 0
    %1339 = vmatmul.mubr.bf16.gmra.mrb[0].mxu0 %v852
    %v1340 = vpop.f32.mrb[0].mxu0
    %v1341 = vadd.f32 %v771, %v1340
    %v1342 = vpop.f32.mrb[0].mxu0
    %v1343 = vadd.f32 %v775, %v1342
    %v1344 = vpop.f32.mrb[0].mxu0
    %v1345 = vadd.f32 %v771, %v1344
    %v1346 = vpop.f32.mrb[0].mxu0
    %v1347 = vadd.f32 %v775, %v1346
    %1348 = vmatprep.mubr.bf16.mxu0 0
    %1349 = vmatmul.mubr.bf16.gmra.mrb[0].mxu0 %v855
    %v1350 = vpop.f32.mrb[0].mxu0
    %v1351 = vadd.f32 %v771, %v1350
    %v1352 = vpop.f32.mrb[0].mxu0
    %v1353 = vadd.f32 %v775, %v1352
    %v1354 = vpop.f32.mrb[0].mxu0
    %v1355 = vadd.f32 %v771, %v1354
    %v1356 = vpop.f32.mrb[0].mxu0
    %v1357 = vadd.f32 %v775, %v1356
    %1358 = vmatprep.mubr.bf16.mxu0 0
    %1359 = vmatmul.mubr.bf16.gmra.mrb[0].mxu0 %v858
    %v1360 = vpop.f32.mrb[0].mxu0
    %v1361 = vadd.f32 %v771, %v1360
    %v1362 = vpop.f32.mrb[0].mxu0
    %v1363 = vadd.f32 %v775, %v1362
    %v1364 = vpop.f32.mrb[0].mxu0
    %v1365 = vadd.f32 %v771, %v1364
    %v1366 = vpop.f32.mrb[0].mxu0
    %v1367 = vadd.f32 %v775, %v1366
    %1368 = vmatprep.mubr.bf16.mxu0 0
    %1369 = vmatmul.mubr.bf16.gmra.mrb[0].mxu0 %v861
    %v1370 = vpop.f32.mrb[0].mxu0
    %v1371 = vadd.f32 %v771, %v1370
    %v1372 = vpop.f32.mrb[0].mxu0
    %v1373 = vadd.f32 %v775, %v1372
    %v1374 = vpop.f32.mrb[0].mxu0
    %v1375 = vadd.f32 %v771, %v1374
    %v1376 = vpop.f32.mrb[0].mxu0
    %v1377 = vadd.f32 %v775, %v1376
    %1378 = vmatprep.mubr.bf16.mxu0 0
    %1379 = vmatmul.mubr.bf16.gmra.mrb[0].mxu0 %v864
    %v1380 = vpop.f32.mrb[0].mxu0
    %v1381 = vadd.f32 %v771, %v1380
    %v1382 = vpop.f32.mrb[0].mxu0
    %v1383 = vadd.f32 %v775, %v1382
    %v1384 = vpop.f32.mrb[0].mxu0
    %v1385 = vadd.f32 %v771, %v1384
    %v1386 = vpop.f32.mrb[0].mxu0
    %v1387 = vadd.f32 %v775, %v1386
    %1388 = vmatprep.mubr.bf16.mxu0 0
    %1389 = vmatmul.mubr.bf16.gmra.mrb[0].mxu0 %v867
    %v1390 = vpop.f32.mrb[0].mxu0
    %v1391 = vadd.f32 %v771, %v1390
    %v1392 = vpop.f32.mrb[0].mxu0
    %v1393 = vadd.f32 %v775, %v1392
    %v1394 = vpop.f32.mrb[0].mxu0
    %v1395 = vadd.f32 %v771, %v1394
    %v1396 = vpop.f32.mrb[0].mxu0
    %v1397 = vadd.f32 %v775, %v1396
    %1398 = vmatprep.mubr.bf16.mxu0 0
    %1399 = vmatmul.mubr.bf16.gmra.mrb[0].mxu0 %v870
    %v1400 = vpop.f32.mrb[0].mxu0
    %v1401 = vadd.f32 %v771, %v1400
    %v1402 = vpop.f32.mrb[0].mxu0
    %v1403 = vadd.f32 %v775, %v1402
    %v1404 = vpop.f32.mrb[0].mxu0
    %v1405 = vadd.f32 %v771, %v1404
    %v1406 = vpop.f32.mrb[0].mxu0
    %v1407 = vadd.f32 %v775, %v1406
    %1408 = vmatprep.mubr.bf16.mxu0 0
    %1409 = vmatmul.mubr.bf16.gmra.mrb[0].mxu0 %v873
    %v1410 = vpop.f32.mrb[0].mxu0
    %v1411 = vadd.f32 %v771, %v1410
    %v1412 = vpop.f32.mrb[0].mxu0
    %v1413 = vadd.f32 %v775, %v1412
    %v1414 = vpop.f32.mrb[0].mxu0
    %v1415 = vadd.f32 %v771, %v1414
    %v1416 = vpop.f32.mrb[0].mxu0
    %v1417 = vadd.f32 %v775, %v1416
    %1418 = vmatprep.mubr.bf16.mxu0 0
    %1419 = vmatmul.mubr.bf16.gmra.mrb[0].mxu0 %v876
    %v1420 = vpop.f32.mrb[0].mxu0
    %v1421 = vadd.f32 %v771, %v1420
    %v1422 = vpop.f32.mrb[0].mxu0
    %v1423 = vadd.f32 %v775, %v1422
    %v1424 = vpop.f32.mrb[0].mxu0
    %v1425 = vadd.f32 %v771, %v1424
    %v1426 = vpop.f32.mrb[0].mxu0
    %v1427 = vadd.f32 %v775, %v1426
    %1428 = vmatprep.mubr.bf16.mxu0 0
    %1429 = vmatmul.mubr.bf16.gmra.mrb[0].mxu0 %v879
    %v1430 = vpop.f32.mrb[0].mxu0
    %v1431 = vadd.f32 %v771, %v1430
    %v1432 = vpop.f32.mrb[0].mxu0
    %v1433 = vadd.f32 %v775, %v1432
    %v1434 = vpop.f32.mrb[0].mxu0
    %v1435 = vadd.f32 %v771, %v1434
    %v1436 = vpop.f32.mrb[0].mxu0
    %v1437 = vadd.f32 %v775, %v1436
    %1438 = vmatprep.mubr.bf16.mxu0 0
    %1439 = vmatmul.mubr.bf16.gmra.mrb[0].mxu0 %v882
    %v1440 = vpop.f32.mrb[0].mxu0
    %v1441 = vadd.f32 %v771, %v1440
    %v1442 = vpop.f32.mrb[0].mxu0
    %v1443 = vadd.f32 %v775, %v1442
    %v1444 = vpop.f32.mrb[0].mxu0
    %v1445 = vadd.f32 %v771, %v1444
    %v1446 = vpop.f32.mrb[0].mxu0
    %v1447 = vadd.f32 %v775, %v1446
    %1448 = vmatprep.mubr.bf16.mxu0 0
    %1449 = vmatmul.mubr.bf16.gmra.mrb[0].mxu0 %v885
    %v1450 = vpop.f32.mrb[0].mxu0
    %v1451 = vadd.f32 %v771, %v1450
    %v1452 = vpop.f32.mrb[0].mxu0
    %v1453 = vadd.f32 %v775, %v1452
    %v1454 = vpop.f32.mrb[0].mxu0
    %v1455 = vadd.f32 %v771, %v1454
    %v1456 = vpop.f32.mrb[0].mxu0
    %v1457 = vadd.f32 %v775, %v1456
    %1458 = vmatprep.mubr.bf16.mxu0 0
    %1459 = vmatmul.mubr.bf16.gmra.mrb[0].mxu0 %v888
    %v1460 = vpop.f32.mrb[0].mxu0
    %v1461 = vadd.f32 %v771, %v1460
    %v1462 = vpop.f32.mrb[0].mxu0
    %v1463 = vadd.f32 %v775, %v1462
    %v1464 = vpop.f32.mrb[0].mxu0
    %v1465 = vadd.f32 %v771, %v1464
    %v1466 = vpop.f32.mrb[0].mxu0
    %v1467 = vadd.f32 %v775, %v1466
    %1468 = vdwg.mxu0
    %v1469 = vmax.f32 %v927, 0.0
    %v1470 = vmax.f32 %v1118, 0.0
    %v1471 = vmax.f32 %v1120, 0.0
    %v1472 = vmax.f32 %v1311, 0.0
    %v1473 = vmax.f32 %v931, 0.0
    %v1474 = vmax.f32 %v1122, 0.0
    %v1475 = vmax.f32 %v1124, 0.0
    %v1476 = vmax.f32 %v1315, 0.0
    %v1477 = vmax.f32 %v937, 0.0
    %v1478 = vmax.f32 %v1128, 0.0
    %v1479 = vmax.f32 %v1130, 0.0
    %v1480 = vmax.f32 %v1321, 0.0
    %v1481 = vmax.f32 %v941, 0.0
    %v1482 = vmax.f32 %v1132, 0.0
    %v1483 = vmax.f32 %v1134, 0.0
    %v1484 = vmax.f32 %v1325, 0.0
    %v1485 = vmax.f32 %v947, 0.0
    %v1486 = vmax.f32 %v1138, 0.0
    %v1487 = vmax.f32 %v1140, 0.0
    %v1488 = vmax.f32 %v1331, 0.0
    %v1489 = vmax.f32 %v951, 0.0
    %v1490 = vmax.f32 %v1142, 0.0
    %v1491 = vmax.f32 %v1144, 0.0
    %v1492 = vmax.f32 %v1335, 0.0
    %v1493 = vmax.f32 %v957, 0.0
    %v1494 = vmax.f32 %v1148, 0.0
    %v1495 = vmax.f32 %v1150, 0.0
    %v1496 = vmax.f32 %v1341, 0.0
    %v1497 = vmax.f32 %v961, 0.0
    %v1498 = vmax.f32 %v1152, 0.0
    %v1499 = vmax.f32 %v1154, 0.0
    %v1500 = vmax.f32 %v1345, 0.0
    %v1501 = vmax.f32 %v967, 0.0
    %v1502 = vmax.f32 %v1158, 0.0
    %v1503 = vmax.f32 %v1160, 0.0
    %v1504 = vmax.f32 %v1351, 0.0
    %v1505 = vmax.f32 %v971, 0.0
    %v1506 = vmax.f32 %v1162, 0.0
    %v1507 = vmax.f32 %v1164, 0.0
    %v1508 = vmax.f32 %v1355, 0.0
    %v1509 = vmax.f32 %v977, 0.0
    %v1510 = vmax.f32 %v1168, 0.0
    %v1511 = vmax.f32 %v1170, 0.0
    %v1512 = vmax.f32 %v1361, 0.0
    %v1513 = vmax.f32 %v981, 0.0
    %v1514 = vmax.f32 %v1172, 0.0
    %v1515 = vmax.f32 %v1174, 0.0
    %v1516 = vmax.f32 %v1365, 0.0
    %v1517 = vmax.f32 %v987, 0.0
    %v1518 = vmax.f32 %v1178, 0.0
    %v1519 = vmax.f32 %v1180, 0.0
    %v1520 = vmax.f32 %v1371, 0.0
    %v1521 = vmax.f32 %v991, 0.0
    %v1522 = vmax.f32 %v1182, 0.0
    %v1523 = vmax.f32 %v1184, 0.0
    %v1524 = vmax.f32 %v1375, 0.0
    %v1525 = vmax.f32 %v997, 0.0
    %v1526 = vmax.f32 %v1188, 0.0
    %v1527 = vmax.f32 %v1190, 0.0
    %v1528 = vmax.f32 %v1381, 0.0
    %v1529 = vmax.f32 %v1001, 0.0
    %v1530 = vmax.f32 %v1192, 0.0
    %v1531 = vmax.f32 %v1194, 0.0
    %v1532 = vmax.f32 %v1385, 0.0
    %v1533 = vmax.f32 %v1007, 0.0
    %v1534 = vmax.f32 %v1198, 0.0
    %v1535 = vmax.f32 %v1200, 0.0
    %v1536 = vmax.f32 %v1391, 0.0
    %v1537 = vmax.f32 %v1011, 0.0
    %v1538 = vmax.f32 %v1202, 0.0
    %v1539 = vmax.f32 %v1204, 0.0
    %v1540 = vmax.f32 %v1395, 0.0
    %v1541 = vmax.f32 %v1017, 0.0
    %v1542 = vmax.f32 %v1208, 0.0
    %v1543 = vmax.f32 %v1210, 0.0
    %v1544 = vmax.f32 %v1401, 0.0
    %v1545 = vmax.f32 %v1021, 0.0
    %v1546 = vmax.f32 %v1212, 0.0
    %v1547 = vmax.f32 %v1214, 0.0
    %v1548 = vmax.f32 %v1405, 0.0
    %v1549 = vmax.f32 %v1027, 0.0
    %v1550 = vmax.f32 %v1218, 0.0
    %v1551 = vmax.f32 %v1220, 0.0
    %v1552 = vmax.f32 %v1411, 0.0
    %v1553 = vmax.f32 %v1031, 0.0
    %v1554 = vmax.f32 %v1222, 0.0
    %v1555 = vmax.f32 %v1224, 0.0
    %v1556 = vmax.f32 %v1415, 0.0
    %v1557 = vmax.f32 %v1037, 0.0
    %v1558 = vmax.f32 %v1228, 0.0
    %v1559 = vmax.f32 %v1230, 0.0
    %v1560 = vmax.f32 %v1421, 0.0
    %v1561 = vmax.f32 %v1041, 0.0
    %v1562 = vmax.f32 %v1232, 0.0
    %v1563 = vmax.f32 %v1234, 0.0
    %v1564 = vmax.f32 %v1425, 0.0
    %v1565 = vmax.f32 %v1047, 0.0
    %v1566 = vmax.f32 %v1238, 0.0
    %v1567 = vmax.f32 %v1240, 0.0
    %v1568 = vmax.f32 %v1431, 0.0
    %v1569 = vmax.f32 %v1051, 0.0
    %v1570 = vmax.f32 %v1242, 0.0
    %v1571 = vmax.f32 %v1244, 0.0
    %v1572 = vmax.f32 %v1435, 0.0
    %v1573 = vmax.f32 %v1057, 0.0
    %v1574 = vmax.f32 %v1248, 0.0
    %v1575 = vmax.f32 %v1250, 0.0
    %v1576 = vmax.f32 %v1441, 0.0
    %v1577 = vmax.f32 %v1061, 0.0
    %v1578 = vmax.f32 %v1252, 0.0
    %v1579 = vmax.f32 %v1254, 0.0
    %v1580 = vmax.f32 %v1445, 0.0
    %v1581 = vmax.f32 %v1067, 0.0
    %v1582 = vmax.f32 %v1258, 0.0
    %v1583 = vmax.f32 %v1260, 0.0
    %v1584 = vmax.f32 %v1451, 0.0
    %v1585 = vmax.f32 %v1071, 0.0
    %v1586 = vmax.f32 %v1262, 0.0
    %v1587 = vmax.f32 %v1264, 0.0
    %v1588 = vmax.f32 %v1455, 0.0
    %v1589 = vmax.f32 %v1077, 0.0
    %v1590 = vmax.f32 %v1268, 0.0
    %v1591 = vmax.f32 %v1270, 0.0
    %v1592 = vmax.f32 %v1461, 0.0
    %v1593 = vmax.f32 %v1081, 0.0
    %v1594 = vmax.f32 %v1272, 0.0
    %v1595 = vmax.f32 %v1274, 0.0
    %v1596 = vmax.f32 %v1465, 0.0
    %v1597 = vpack.c.bf16 %v1473, %v1469
    %v1598 = vpack.c.bf16 %v1474, %v1470
    %v1599 = vpack.c.bf16 %v1475, %v1471
    %v1600 = vpack.c.bf16 %v1476, %v1472
    %v1601 = vpack.c.bf16 %v1481, %v1477
    %v1602 = vpack.c.bf16 %v1482, %v1478
    %v1603 = vpack.c.bf16 %v1483, %v1479
    %v1604 = vpack.c.bf16 %v1484, %v1480
    %v1605 = vpack.c.bf16 %v1489, %v1485
    %v1606 = vpack.c.bf16 %v1490, %v1486
    %v1607 = vpack.c.bf16 %v1491, %v1487
    %v1608 = vpack.c.bf16 %v1492, %v1488
    %v1609 = vpack.c.bf16 %v1497, %v1493
    %v1610 = vpack.c.bf16 %v1498, %v1494
    %v1611 = vpack.c.bf16 %v1499, %v1495
    %v1612 = vpack.c.bf16 %v1500, %v1496
    %v1613 = vpack.c.bf16 %v1505, %v1501
    %v1614 = vpack.c.bf16 %v1506, %v1502
    %v1615 = vpack.c.bf16 %v1507, %v1503
    %v1616 = vpack.c.bf16 %v1508, %v1504
    %v1617 = vpack.c.bf16 %v1513, %v1509
    %v1618 = vpack.c.bf16 %v1514, %v1510
    %v1619 = vpack.c.bf16 %v1515, %v1511
    %v1620 = vpack.c.bf16 %v1516, %v1512
    %v1621 = vpack.c.bf16 %v1521, %v1517
    %v1622 = vpack.c.bf16 %v1522, %v1518
    %v1623 = vpack.c.bf16 %v1523, %v1519
    %v1624 = vpack.c.bf16 %v1524, %v1520
    %v1625 = vpack.c.bf16 %v1529, %v1525
    %v1626 = vpack.c.bf16 %v1530, %v1526
    %v1627 = vpack.c.bf16 %v1531, %v1527
    %v1628 = vpack.c.bf16 %v1532, %v1528
    %v1629 = vpack.c.bf16 %v1537, %v1533
    %v1630 = vpack.c.bf16 %v1538, %v1534
    %v1631 = vpack.c.bf16 %v1539, %v1535
    %v1632 = vpack.c.bf16 %v1540, %v1536
    %v1633 = vpack.c.bf16 %v1545, %v1541
    %v1634 = vpack.c.bf16 %v1546, %v1542
    %v1635 = vpack.c.bf16 %v1547, %v1543
    %v1636 = vpack.c.bf16 %v1548, %v1544
    %v1637 = vpack.c.bf16 %v1553, %v1549
    %v1638 = vpack.c.bf16 %v1554, %v1550
    %v1639 = vpack.c.bf16 %v1555, %v1551
    %v1640 = vpack.c.bf16 %v1556, %v1552
    %v1641 = vpack.c.bf16 %v1561, %v1557
    %v1642 = vpack.c.bf16 %v1562, %v1558
    %v1643 = vpack.c.bf16 %v1563, %v1559
    %v1644 = vpack.c.bf16 %v1564, %v1560
    %v1645 = vpack.c.bf16 %v1569, %v1565
    %v1646 = vpack.c.bf16 %v1570, %v1566
    %v1647 = vpack.c.bf16 %v1571, %v1567
    %v1648 = vpack.c.bf16 %v1572, %v1568
    %v1649 = vpack.c.bf16 %v1577, %v1573
    %v1650 = vpack.c.bf16 %v1578, %v1574
    %v1651 = vpack.c.bf16 %v1579, %v1575
    %v1652 = vpack.c.bf16 %v1580, %v1576
    %v1653 = vpack.c.bf16 %v1585, %v1581
    %v1654 = vpack.c.bf16 %v1586, %v1582
    %v1655 = vpack.c.bf16 %v1587, %v1583
    %v1656 = vpack.c.bf16 %v1588, %v1584
    %v1657 = vpack.c.bf16 %v1593, %v1589
    %v1658 = vpack.c.bf16 %v1594, %v1590
    %v1659 = vpack.c.bf16 %v1595, %v1591
    %v1660 = vpack.c.bf16 %v1596, %v1592
    %v1661 = vld [vmem:[#allocation2] sm:$0xf]
    %v1662 = vld [vmem:[#allocation2 + $0x4] sm:$0xf]
    %v1663 = vld [vmem:[#allocation2 + $0x8] sm:$0xf]
    %v1664 = vld [vmem:[#allocation2 + $0xc] sm:$0xf]
    %v1665 = vld [vmem:[#allocation2 + $0x10] sm:$0xf]
    %v1666 = vld [vmem:[#allocation2 + $0x14] sm:$0xf]
    %v1667 = vld [vmem:[#allocation2 + $0x18] sm:$0xf]
    %v1668 = vld [vmem:[#allocation2 + $0x1c] sm:$0xf]
    %v1669 = vld [vmem:[#allocation2 + $0x20] sm:$0xf]
    %v1670 = vld [vmem:[#allocation2 + $0x24] sm:$0xf]
    %v1671 = vld [vmem:[#allocation2 + $0x28] sm:$0xf]
    %v1672 = vld [vmem:[#allocation2 + $0x2c] sm:$0xf]
    %v1673 = vld [vmem:[#allocation2 + $0x30] sm:$0xf]
    %v1674 = vld [vmem:[#allocation2 + $0x34] sm:$0xf]
    %v1675 = vld [vmem:[#allocation2 + $0x38] sm:$0xf]
    %v1676 = vld [vmem:[#allocation2 + $0x3c] sm:$0xf]
    %v1677 = vld [vmem:[#allocation2 + $0x40] sm:$0xf]
    %v1678 = vld [vmem:[#allocation2 + $0x44] sm:$0xf]
    %v1679 = vld [vmem:[#allocation2 + $0x48] sm:$0xf]
    %v1680 = vld [vmem:[#allocation2 + $0x4c] sm:$0xf]
    %v1681 = vld [vmem:[#allocation2 + $0x50] sm:$0xf]
    %v1682 = vld [vmem:[#allocation2 + $0x54] sm:$0xf]
    %v1683 = vld [vmem:[#allocation2 + $0x58] sm:$0xf]
    %v1684 = vld [vmem:[#allocation2 + $0x5c] sm:$0xf]
    %v1685 = vld [vmem:[#allocation2 + $0x60] sm:$0xf]
    %v1686 = vld [vmem:[#allocation2 + $0x64] sm:$0xf]
    %v1687 = vld [vmem:[#allocation2 + $0x68] sm:$0xf]
    %v1688 = vld [vmem:[#allocation2 + $0x6c] sm:$0xf]
    %v1689 = vld [vmem:[#allocation2 + $0x70] sm:$0xf]
    %v1690 = vld [vmem:[#allocation2 + $0x74] sm:$0xf]
    %v1691 = vld [vmem:[#allocation2 + $0x78] sm:$0xf]
    %v1692 = vld [vmem:[#allocation2 + $0x7c] sm:$0xf]
    %v1693 = vld [vmem:[#allocation2 + $0x80] sm:$0xf]
    %v1694 = vld [vmem:[#allocation2 + $0x84] sm:$0xf]
    %v1695 = vld [vmem:[#allocation2 + $0x88] sm:$0xf]
    %v1696 = vld [vmem:[#allocation2 + $0x8c] sm:$0xf]
    %v1697 = vld [vmem:[#allocation2 + $0x90] sm:$0xf]
    %v1698 = vld [vmem:[#allocation2 + $0x94] sm:$0xf]
    %v1699 = vld [vmem:[#allocation2 + $0x98] sm:$0xf]
    %v1700 = vld [vmem:[#allocation2 + $0x9c] sm:$0xf]
    %v1701 = vld [vmem:[#allocation2 + $0xa0] sm:$0xf]
    %v1702 = vld [vmem:[#allocation2 + $0xa4] sm:$0xf]
    %v1703 = vld [vmem:[#allocation2 + $0xa8] sm:$0xf]
    %v1704 = vld [vmem:[#allocation2 + $0xac] sm:$0xf]
    %v1705 = vld [vmem:[#allocation2 + $0xb0] sm:$0xf]
    %v1706 = vld [vmem:[#allocation2 + $0xb4] sm:$0xf]
    %v1707 = vld [vmem:[#allocation2 + $0xb8] sm:$0xf]
    %v1708 = vld [vmem:[#allocation2 + $0xbc] sm:$0xf]
    %v1709 = vld [vmem:[#allocation2 + $0xc0] sm:$0xf]
    %v1710 = vld [vmem:[#allocation2 + $0xc4] sm:$0xf]
    %v1711 = vld [vmem:[#allocation2 + $0xc8] sm:$0xf]
    %v1712 = vld [vmem:[#allocation2 + $0xcc] sm:$0xf]
    %v1713 = vld [vmem:[#allocation2 + $0xd0] sm:$0xf]
    %v1714 = vld [vmem:[#allocation2 + $0xd4] sm:$0xf]
    %v1715 = vld [vmem:[#allocation2 + $0xd8] sm:$0xf]
    %v1716 = vld [vmem:[#allocation2 + $0xdc] sm:$0xf]
    %v1717 = vld [vmem:[#allocation2 + $0xe0] sm:$0xf]
    %v1718 = vld [vmem:[#allocation2 + $0xe4] sm:$0xf]
    %v1719 = vld [vmem:[#allocation2 + $0xe8] sm:$0xf]
    %v1720 = vld [vmem:[#allocation2 + $0xec] sm:$0xf]
    %v1721 = vld [vmem:[#allocation2 + $0xf0] sm:$0xf]
    %v1722 = vld [vmem:[#allocation2 + $0xf4] sm:$0xf]
    %v1723 = vld [vmem:[#allocation2 + $0xf8] sm:$0xf]
    %v1724 = vld [vmem:[#allocation2 + $0xfc] sm:$0xf]
    %v1725 = vld [vmem:[%s8] sm:$0x1]
    %v1727 = vlaneseq
    %v1728 = vshrl.u32 %v1727, 7
    %v1729 = vsub.s32 0, %v1728
    %v1730 = vrot.slane %v1725, %v1729
    %v1796 = vunpack.c.l.b16 %v1661
    %v1797 = vunpack.c.l.b16 %v1662
    %v1798 = vunpack.c.l.b16 %v1663
    %v1799 = vunpack.c.l.b16 %v1664
    %v1800 = vunpack.c.l.b16 %v1665
    %v1801 = vunpack.c.l.b16 %v1666
    %v1802 = vunpack.c.l.b16 %v1667
    %v1803 = vunpack.c.l.b16 %v1668
    %v1804 = vunpack.c.l.b16 %v1669
    %v1805 = vunpack.c.l.b16 %v1670
    %v1806 = vunpack.c.l.b16 %v1671
    %v1807 = vunpack.c.l.b16 %v1672
    %v1808 = vunpack.c.l.b16 %v1673
    %v1809 = vunpack.c.l.b16 %v1674
    %v1810 = vunpack.c.l.b16 %v1675
    %v1811 = vunpack.c.l.b16 %v1676
    %v1812 = vunpack.c.l.b16 %v1677
    %v1813 = vunpack.c.l.b16 %v1678
    %v1814 = vunpack.c.l.b16 %v1679
    %v1815 = vunpack.c.l.b16 %v1680
    %v1816 = vunpack.c.l.b16 %v1681
    %v1817 = vunpack.c.l.b16 %v1682
    %v1818 = vunpack.c.l.b16 %v1683
    %v1819 = vunpack.c.l.b16 %v1684
    %v1820 = vunpack.c.l.b16 %v1685
    %v1821 = vunpack.c.l.b16 %v1686
    %v1822 = vunpack.c.l.b16 %v1687
    %v1823 = vunpack.c.l.b16 %v1688
    %v1824 = vunpack.c.l.b16 %v1689
    %v1825 = vunpack.c.l.b16 %v1690
    %v1826 = vunpack.c.l.b16 %v1691
    %v1827 = vunpack.c.l.b16 %v1692
    %v1828 = vunpack.c.l.b16 %v1693
    %v1829 = vunpack.c.l.b16 %v1694
    %v1830 = vunpack.c.l.b16 %v1695
    %v1831 = vunpack.c.l.b16 %v1696
    %v1832 = vunpack.c.l.b16 %v1697
    %v1833 = vunpack.c.l.b16 %v1698
    %v1834 = vunpack.c.l.b16 %v1699
    %v1835 = vunpack.c.l.b16 %v1700
    %v1836 = vunpack.c.l.b16 %v1701
    %v1837 = vunpack.c.l.b16 %v1702
    %v1838 = vunpack.c.l.b16 %v1703
    %v1839 = vunpack.c.l.b16 %v1704
    %v1840 = vunpack.c.l.b16 %v1705
    %v1841 = vunpack.c.l.b16 %v1706
    %v1842 = vunpack.c.l.b16 %v1707
    %v1843 = vunpack.c.l.b16 %v1708
    %v1844 = vunpack.c.l.b16 %v1709
    %v1845 = vunpack.c.l.b16 %v1710
    %v1846 = vunpack.c.l.b16 %v1711
    %v1847 = vunpack.c.l.b16 %v1712
    %v1848 = vunpack.c.l.b16 %v1713
    %v1849 = vunpack.c.l.b16 %v1714
    %v1850 = vunpack.c.l.b16 %v1715
    %v1851 = vunpack.c.l.b16 %v1716
    %v1852 = vunpack.c.l.b16 %v1717
    %v1853 = vunpack.c.l.b16 %v1718
    %v1854 = vunpack.c.l.b16 %v1719
    %v1855 = vunpack.c.l.b16 %v1720
    %v1856 = vunpack.c.l.b16 %v1721
    %v1857 = vunpack.c.l.b16 %v1722
    %v1858 = vunpack.c.l.b16 %v1723
    %v1859 = vunpack.c.l.b16 %v1724
    %v1860 = vpack.c.b16 %v1797, %v1796
    %v1861 = vpack.c.b16 %v1799, %v1798
    %v1862 = vpack.c.b16 %v1801, %v1800
    %v1863 = vpack.c.b16 %v1803, %v1802
    %v1864 = vpack.c.b16 %v1805, %v1804
    %v1865 = vpack.c.b16 %v1807, %v1806
    %v1866 = vpack.c.b16 %v1809, %v1808
    %v1867 = vpack.c.b16 %v1811, %v1810
    %v1868 = vpack.c.b16 %v1813, %v1812
    %v1869 = vpack.c.b16 %v1815, %v1814
    %v1870 = vpack.c.b16 %v1817, %v1816
    %v1871 = vpack.c.b16 %v1819, %v1818
    %v1872 = vpack.c.b16 %v1821, %v1820
    %v1873 = vpack.c.b16 %v1823, %v1822
    %v1874 = vpack.c.b16 %v1825, %v1824
    %v1875 = vpack.c.b16 %v1827, %v1826
    %v1876 = vpack.c.b16 %v1829, %v1828
    %v1877 = vpack.c.b16 %v1831, %v1830
    %v1878 = vpack.c.b16 %v1833, %v1832
    %v1879 = vpack.c.b16 %v1835, %v1834
    %v1880 = vpack.c.b16 %v1837, %v1836
    %v1881 = vpack.c.b16 %v1839, %v1838
    %v1882 = vpack.c.b16 %v1841, %v1840
    %v1883 = vpack.c.b16 %v1843, %v1842
    %v1884 = vpack.c.b16 %v1845, %v1844
    %v1885 = vpack.c.b16 %v1847, %v1846
    %v1886 = vpack.c.b16 %v1849, %v1848
    %v1887 = vpack.c.b16 %v1851, %v1850
    %v1888 = vpack.c.b16 %v1853, %v1852
    %v1889 = vpack.c.b16 %v1855, %v1854
    %v1890 = vpack.c.b16 %v1857, %v1856
    %v1891 = vpack.c.b16 %v1859, %v1858
    %1924 = vmatprep.subr.bf16.mxu0 0
    %1925 = vmatpush1.bf16.msra.mxu0 %v1860
    %1926 = vmatprep.subr.bf16.mxu0 0
    %1927 = vmatpush1.bf16.msra.mxu0 %v1861
    %1928 = vmatprep.subr.bf16.mxu0 0
    %1929 = vmatpush1.bf16.msra.mxu0 %v1862
    %1930 = vmatprep.subr.bf16.mxu0 0
    %1931 = vmatpush1.bf16.msra.mxu0 %v1863
    %1932 = vmatprep.subr.bf16.mxu0 0
    %1933 = vmatpush1.bf16.msra.mxu0 %v1864
    %1934 = vmatprep.subr.bf16.mxu0 0
    %1935 = vmatpush1.bf16.msra.mxu0 %v1865
    %1936 = vmatprep.subr.bf16.mxu0 0
    %1937 = vmatpush1.bf16.msra.mxu0 %v1866
    %1938 = vmatprep.subr.bf16.mxu0 0
    %1939 = vmatpush1.bf16.msra.mxu0 %v1867
    %1940 = vmatprep.subr.bf16.mxu0 0
    %1941 = vmatpush1.bf16.msra.mxu0 %v1868
    %1942 = vmatprep.subr.bf16.mxu0 0
    %1943 = vmatpush1.bf16.msra.mxu0 %v1869
    %1944 = vmatprep.subr.bf16.mxu0 0
    %1945 = vmatpush1.bf16.msra.mxu0 %v1870
    %1946 = vmatprep.subr.bf16.mxu0 0
    %1947 = vmatpush1.bf16.msra.mxu0 %v1871
    %1948 = vmatprep.subr.bf16.mxu0 0
    %1949 = vmatpush1.bf16.msra.mxu0 %v1872
    %1950 = vmatprep.subr.bf16.mxu0 0
    %1951 = vmatpush1.bf16.msra.mxu0 %v1873
    %1952 = vmatprep.subr.bf16.mxu0 0
    %1953 = vmatpush1.bf16.msra.mxu0 %v1874
    %1954 = vmatprep.subr.bf16.mxu0 0
    %1955 = vmatpush1.bf16.msra.mxu0 %v1875
    %1956 = vmatprep.mubr.bf16.mxu0 %v1598
    %1957 = vmatmul.mubr.bf16.gmra.mrb[0].mxu0 %v1597
    %v1958 = vpop.f32.mrb[0].mxu0
    %v1959 = vadd.f32 %v1730, %v1958
    %v1960 = vpop.f32.mrb[0].mxu0
    %v1961 = vpop.f32.mrb[0].mxu0
    %v1962 = vadd.f32 %v1730, %v1961
    %v1963 = vpop.f32.mrb[0].mxu0
    %1964 = vmatprep.mubr.bf16.mxu0 %v1602
    %1965 = vmatmul.mubr.bf16.gmra.mrb[0].mxu0 %v1601
    %v1966 = vpop.f32.mrb[0].mxu0
    %v1967 = vadd.f32 %v1730, %v1966
    %v1968 = vpop.f32.mrb[0].mxu0
    %v1969 = vpop.f32.mrb[0].mxu0
    %v1970 = vadd.f32 %v1730, %v1969
    %v1971 = vpop.f32.mrb[0].mxu0
    %1972 = vmatprep.mubr.bf16.mxu0 %v1606
    %1973 = vmatmul.mubr.bf16.gmra.mrb[0].mxu0 %v1605
    %v1974 = vpop.f32.mrb[0].mxu0
    %v1975 = vadd.f32 %v1730, %v1974
    %v1976 = vpop.f32.mrb[0].mxu0
    %v1977 = vpop.f32.mrb[0].mxu0
    %v1978 = vadd.f32 %v1730, %v1977
    %v1979 = vpop.f32.mrb[0].mxu0
    %1980 = vmatprep.mubr.bf16.mxu0 %v1610
    %1981 = vmatmul.mubr.bf16.gmra.mrb[0].mxu0 %v1609
    %v1982 = vpop.f32.mrb[0].mxu0
    %v1983 = vadd.f32 %v1730, %v1982
    %v1984 = vpop.f32.mrb[0].mxu0
    %v1985 = vpop.f32.mrb[0].mxu0
    %v1986 = vadd.f32 %v1730, %v1985
    %v1987 = vpop.f32.mrb[0].mxu0
    %1988 = vmatprep.mubr.bf16.mxu0 %v1614
    %1989 = vmatmul.mubr.bf16.gmra.mrb[0].mxu0 %v1613
    %v1990 = vpop.f32.mrb[0].mxu0
    %v1991 = vadd.f32 %v1730, %v1990
    %v1992 = vpop.f32.mrb[0].mxu0
    %v1993 = vpop.f32.mrb[0].mxu0
    %v1994 = vadd.f32 %v1730, %v1993
    %v1995 = vpop.f32.mrb[0].mxu0
    %1996 = vmatprep.mubr.bf16.mxu0 %v1618
    %1997 = vmatmul.mubr.bf16.gmra.mrb[0].mxu0 %v1617
    %v1998 = vpop.f32.mrb[0].mxu0
    %v1999 = vadd.f32 %v1730, %v1998
    %v2000 = vpop.f32.mrb[0].mxu0
    %v2001 = vpop.f32.mrb[0].mxu0
    %v2002 = vadd.f32 %v1730, %v2001
    %v2003 = vpop.f32.mrb[0].mxu0
    %2004 = vmatprep.mubr.bf16.mxu0 %v1622
    %2005 = vmatmul.mubr.bf16.gmra.mrb[0].mxu0 %v1621
    %v2006 = vpop.f32.mrb[0].mxu0
    %v2007 = vadd.f32 %v1730, %v2006
    %v2008 = vpop.f32.mrb[0].mxu0
    %v2009 = vpop.f32.mrb[0].mxu0
    %v2010 = vadd.f32 %v1730, %v2009
    %v2011 = vpop.f32.mrb[0].mxu0
    %2012 = vmatprep.mubr.bf16.mxu0 %v1626
    %2013 = vmatmul.mubr.bf16.gmra.mrb[0].mxu0 %v1625
    %v2014 = vpop.f32.mrb[0].mxu0
    %v2015 = vadd.f32 %v1730, %v2014
    %v2016 = vpop.f32.mrb[0].mxu0
    %v2017 = vpop.f32.mrb[0].mxu0
    %v2018 = vadd.f32 %v1730, %v2017
    %v2019 = vpop.f32.mrb[0].mxu0
    %2020 = vmatprep.mubr.bf16.mxu0 %v1630
    %2021 = vmatmul.mubr.bf16.gmra.mrb[0].mxu0 %v1629
    %v2022 = vpop.f32.mrb[0].mxu0
    %v2023 = vadd.f32 %v1730, %v2022
    %v2024 = vpop.f32.mrb[0].mxu0
    %v2025 = vpop.f32.mrb[0].mxu0
    %v2026 = vadd.f32 %v1730, %v2025
    %v2027 = vpop.f32.mrb[0].mxu0
    %2028 = vmatprep.mubr.bf16.mxu0 %v1634
    %2029 = vmatmul.mubr.bf16.gmra.mrb[0].mxu0 %v1633
    %v2030 = vpop.f32.mrb[0].mxu0
    %v2031 = vadd.f32 %v1730, %v2030
    %v2032 = vpop.f32.mrb[0].mxu0
    %v2033 = vpop.f32.mrb[0].mxu0
    %v2034 = vadd.f32 %v1730, %v2033
    %v2035 = vpop.f32.mrb[0].mxu0
    %2036 = vmatprep.mubr.bf16.mxu0 %v1638
    %2037 = vmatmul.mubr.bf16.gmra.mrb[0].mxu0 %v1637
    %v2038 = vpop.f32.mrb[0].mxu0
    %v2039 = vadd.f32 %v1730, %v2038
    %v2040 = vpop.f32.mrb[0].mxu0
    %v2041 = vpop.f32.mrb[0].mxu0
    %v2042 = vadd.f32 %v1730, %v2041
    %v2043 = vpop.f32.mrb[0].mxu0
    %2044 = vmatprep.mubr.bf16.mxu0 %v1642
    %2045 = vmatmul.mubr.bf16.gmra.mrb[0].mxu0 %v1641
    %v2046 = vpop.f32.mrb[0].mxu0
    %v2047 = vadd.f32 %v1730, %v2046
    %v2048 = vpop.f32.mrb[0].mxu0
    %v2049 = vpop.f32.mrb[0].mxu0
    %v2050 = vadd.f32 %v1730, %v2049
    %v2051 = vpop.f32.mrb[0].mxu0
    %2052 = vmatprep.mubr.bf16.mxu0 %v1646
    %2053 = vmatmul.mubr.bf16.gmra.mrb[0].mxu0 %v1645
    %v2054 = vpop.f32.mrb[0].mxu0
    %v2055 = vadd.f32 %v1730, %v2054
    %v2056 = vpop.f32.mrb[0].mxu0
    %v2057 = vpop.f32.mrb[0].mxu0
    %v2058 = vadd.f32 %v1730, %v2057
    %v2059 = vpop.f32.mrb[0].mxu0
    %2060 = vmatprep.mubr.bf16.mxu0 %v1650
    %2061 = vmatmul.mubr.bf16.gmra.mrb[0].mxu0 %v1649
    %v2062 = vpop.f32.mrb[0].mxu0
    %v2063 = vadd.f32 %v1730, %v2062
    %v2064 = vpop.f32.mrb[0].mxu0
    %v2065 = vpop.f32.mrb[0].mxu0
    %v2066 = vadd.f32 %v1730, %v2065
    %v2067 = vpop.f32.mrb[0].mxu0
    %2068 = vmatprep.mubr.bf16.mxu0 %v1654
    %2069 = vmatmul.mubr.bf16.gmra.mrb[0].mxu0 %v1653
    %v2070 = vpop.f32.mrb[0].mxu0
    %v2071 = vadd.f32 %v1730, %v2070
    %v2072 = vpop.f32.mrb[0].mxu0
    %v2073 = vpop.f32.mrb[0].mxu0
    %v2074 = vadd.f32 %v1730, %v2073
    %v2075 = vpop.f32.mrb[0].mxu0
    %2076 = vmatprep.mubr.bf16.mxu0 %v1658
    %2077 = vmatmul.mubr.bf16.gmra.mrb[0].mxu0 %v1657
    %v2078 = vpop.f32.mrb[0].mxu0
    %v2079 = vadd.f32 %v1730, %v2078
    %v2080 = vpop.f32.mrb[0].mxu0
    %v2081 = vpop.f32.mrb[0].mxu0
    %v2082 = vadd.f32 %v1730, %v2081
    %v2083 = vpop.f32.mrb[0].mxu0
    %2084 = vdwg.mxu0
    %2085 = vmatprep.subr.bf16.mxu0 0
    %2086 = vmatpush1.bf16.msra.mxu0 %v1876
    %2087 = vmatprep.subr.bf16.mxu0 0
    %2088 = vmatpush1.bf16.msra.mxu0 %v1877
    %2089 = vmatprep.subr.bf16.mxu0 0
    %2090 = vmatpush1.bf16.msra.mxu0 %v1878
    %2091 = vmatprep.subr.bf16.mxu0 0
    %2092 = vmatpush1.bf16.msra.mxu0 %v1879
    %2093 = vmatprep.subr.bf16.mxu0 0
    %2094 = vmatpush1.bf16.msra.mxu0 %v1880
    %2095 = vmatprep.subr.bf16.mxu0 0
    %2096 = vmatpush1.bf16.msra.mxu0 %v1881
    %2097 = vmatprep.subr.bf16.mxu0 0
    %2098 = vmatpush1.bf16.msra.mxu0 %v1882
    %2099 = vmatprep.subr.bf16.mxu0 0
    %2100 = vmatpush1.bf16.msra.mxu0 %v1883
    %2101 = vmatprep.subr.bf16.mxu0 0
    %2102 = vmatpush1.bf16.msra.mxu0 %v1884
    %2103 = vmatprep.subr.bf16.mxu0 0
    %2104 = vmatpush1.bf16.msra.mxu0 %v1885
    %2105 = vmatprep.subr.bf16.mxu0 0
    %2106 = vmatpush1.bf16.msra.mxu0 %v1886
    %2107 = vmatprep.subr.bf16.mxu0 0
    %2108 = vmatpush1.bf16.msra.mxu0 %v1887
    %2109 = vmatprep.subr.bf16.mxu0 0
    %2110 = vmatpush1.bf16.msra.mxu0 %v1888
    %2111 = vmatprep.subr.bf16.mxu0 0
    %2112 = vmatpush1.bf16.msra.mxu0 %v1889
    %2113 = vmatprep.subr.bf16.mxu0 0
    %2114 = vmatpush1.bf16.msra.mxu0 %v1890
    %2115 = vmatprep.subr.bf16.mxu0 0
    %2116 = vmatpush1.bf16.msra.mxu0 %v1891
    %2117 = vmatprep.mubr.bf16.mxu0 %v1600
    %2118 = vmatmul.mubr.bf16.gmra.mrb[0].mxu0 %v1599
    %v2119 = vpop.f32.mrb[0].mxu0
    %v2120 = vadd.f32 %v1959, %v2119
    %v2121 = vpop.f32.mrb[0].mxu0
    %v2122 = vpop.f32.mrb[0].mxu0
    %v2123 = vadd.f32 %v1962, %v2122
    %v2124 = vpop.f32.mrb[0].mxu0
    %2125 = vmatprep.mubr.bf16.mxu0 %v1604
    %2126 = vmatmul.mubr.bf16.gmra.mrb[0].mxu0 %v1603
    %v2127 = vpop.f32.mrb[0].mxu0
    %v2128 = vadd.f32 %v1967, %v2127
    %v2129 = vpop.f32.mrb[0].mxu0
    %v2130 = vpop.f32.mrb[0].mxu0
    %v2131 = vadd.f32 %v1970, %v2130
    %v2132 = vpop.f32.mrb[0].mxu0
    %2133 = vmatprep.mubr.bf16.mxu0 %v1608
    %2134 = vmatmul.mubr.bf16.gmra.mrb[0].mxu0 %v1607
    %v2135 = vpop.f32.mrb[0].mxu0
    %v2136 = vadd.f32 %v1975, %v2135
    %v2137 = vpop.f32.mrb[0].mxu0
    %v2138 = vpop.f32.mrb[0].mxu0
    %v2139 = vadd.f32 %v1978, %v2138
    %v2140 = vpop.f32.mrb[0].mxu0
    %2141 = vmatprep.mubr.bf16.mxu0 %v1612
    %2142 = vmatmul.mubr.bf16.gmra.mrb[0].mxu0 %v1611
    %v2143 = vpop.f32.mrb[0].mxu0
    %v2144 = vadd.f32 %v1983, %v2143
    %v2145 = vpop.f32.mrb[0].mxu0
    %v2146 = vpop.f32.mrb[0].mxu0
    %v2147 = vadd.f32 %v1986, %v2146
    %v2148 = vpop.f32.mrb[0].mxu0
    %2149 = vmatprep.mubr.bf16.mxu0 %v1616
    %2150 = vmatmul.mubr.bf16.gmra.mrb[0].mxu0 %v1615
    %v2151 = vpop.f32.mrb[0].mxu0
    %v2152 = vadd.f32 %v1991, %v2151
    %v2153 = vpop.f32.mrb[0].mxu0
    %v2154 = vpop.f32.mrb[0].mxu0
    %v2155 = vadd.f32 %v1994, %v2154
    %v2156 = vpop.f32.mrb[0].mxu0
    %2157 = vmatprep.mubr.bf16.mxu0 %v1620
    %2158 = vmatmul.mubr.bf16.gmra.mrb[0].mxu0 %v1619
    %v2159 = vpop.f32.mrb[0].mxu0
    %v2160 = vadd.f32 %v1999, %v2159
    %v2161 = vpop.f32.mrb[0].mxu0
    %v2162 = vpop.f32.mrb[0].mxu0
    %v2163 = vadd.f32 %v2002, %v2162
    %v2164 = vpop.f32.mrb[0].mxu0
    %2165 = vmatprep.mubr.bf16.mxu0 %v1624
    %2166 = vmatmul.mubr.bf16.gmra.mrb[0].mxu0 %v1623
    %v2167 = vpop.f32.mrb[0].mxu0
    %v2168 = vadd.f32 %v2007, %v2167
    %v2169 = vpop.f32.mrb[0].mxu0
    %v2170 = vpop.f32.mrb[0].mxu0
    %v2171 = vadd.f32 %v2010, %v2170
    %v2172 = vpop.f32.mrb[0].mxu0
    %2173 = vmatprep.mubr.bf16.mxu0 %v1628
    %2174 = vmatmul.mubr.bf16.gmra.mrb[0].mxu0 %v1627
    %v2175 = vpop.f32.mrb[0].mxu0
    %v2176 = vadd.f32 %v2015, %v2175
    %v2177 = vpop.f32.mrb[0].mxu0
    %v2178 = vpop.f32.mrb[0].mxu0
    %v2179 = vadd.f32 %v2018, %v2178
    %v2180 = vpop.f32.mrb[0].mxu0
    %2181 = vmatprep.mubr.bf16.mxu0 %v1632
    %2182 = vmatmul.mubr.bf16.gmra.mrb[0].mxu0 %v1631
    %v2183 = vpop.f32.mrb[0].mxu0
    %v2184 = vadd.f32 %v2023, %v2183
    %v2185 = vpop.f32.mrb[0].mxu0
    %v2186 = vpop.f32.mrb[0].mxu0
    %v2187 = vadd.f32 %v2026, %v2186
    %v2188 = vpop.f32.mrb[0].mxu0
    %2189 = vmatprep.mubr.bf16.mxu0 %v1636
    %2190 = vmatmul.mubr.bf16.gmra.mrb[0].mxu0 %v1635
    %v2191 = vpop.f32.mrb[0].mxu0
    %v2192 = vadd.f32 %v2031, %v2191
    %v2193 = vpop.f32.mrb[0].mxu0
    %v2194 = vpop.f32.mrb[0].mxu0
    %v2195 = vadd.f32 %v2034, %v2194
    %v2196 = vpop.f32.mrb[0].mxu0
    %2197 = vmatprep.mubr.bf16.mxu0 %v1640
    %2198 = vmatmul.mubr.bf16.gmra.mrb[0].mxu0 %v1639
    %v2199 = vpop.f32.mrb[0].mxu0
    %v2200 = vadd.f32 %v2039, %v2199
    %v2201 = vpop.f32.mrb[0].mxu0
    %v2202 = vpop.f32.mrb[0].mxu0
    %v2203 = vadd.f32 %v2042, %v2202
    %v2204 = vpop.f32.mrb[0].mxu0
    %2205 = vmatprep.mubr.bf16.mxu0 %v1644
    %2206 = vmatmul.mubr.bf16.gmra.mrb[0].mxu0 %v1643
    %v2207 = vpop.f32.mrb[0].mxu0
    %v2208 = vadd.f32 %v2047, %v2207
    %v2209 = vpop.f32.mrb[0].mxu0
    %v2210 = vpop.f32.mrb[0].mxu0
    %v2211 = vadd.f32 %v2050, %v2210
    %v2212 = vpop.f32.mrb[0].mxu0
    %2213 = vmatprep.mubr.bf16.mxu0 %v1648
    %2214 = vmatmul.mubr.bf16.gmra.mrb[0].mxu0 %v1647
    %v2215 = vpop.f32.mrb[0].mxu0
    %v2216 = vadd.f32 %v2055, %v2215
    %v2217 = vpop.f32.mrb[0].mxu0
    %v2218 = vpop.f32.mrb[0].mxu0
    %v2219 = vadd.f32 %v2058, %v2218
    %v2220 = vpop.f32.mrb[0].mxu0
    %2221 = vmatprep.mubr.bf16.mxu0 %v1652
    %2222 = vmatmul.mubr.bf16.gmra.mrb[0].mxu0 %v1651
    %v2223 = vpop.f32.mrb[0].mxu0
    %v2224 = vadd.f32 %v2063, %v2223
    %v2225 = vpop.f32.mrb[0].mxu0
    %v2226 = vpop.f32.mrb[0].mxu0
    %v2227 = vadd.f32 %v2066, %v2226
    %v2228 = vpop.f32.mrb[0].mxu0
    %2229 = vmatprep.mubr.bf16.mxu0 %v1656
    %2230 = vmatmul.mubr.bf16.gmra.mrb[0].mxu0 %v1655
    %v2231 = vpop.f32.mrb[0].mxu0
    %v2232 = vadd.f32 %v2071, %v2231
    %v2233 = vpop.f32.mrb[0].mxu0
    %v2234 = vpop.f32.mrb[0].mxu0
    %v2235 = vadd.f32 %v2074, %v2234
    %v2236 = vpop.f32.mrb[0].mxu0
    %2237 = vmatprep.mubr.bf16.mxu0 %v1660
    %2238 = vmatmul.mubr.bf16.gmra.mrb[0].mxu0 %v1659
    %v2239 = vpop.f32.mrb[0].mxu0
    %v2240 = vadd.f32 %v2079, %v2239
    %v2241 = vpop.f32.mrb[0].mxu0
    %v2242 = vpop.f32.mrb[0].mxu0
    %v2243 = vadd.f32 %v2082, %v2242
    %v2244 = vpop.f32.mrb[0].mxu0
    %2245 = vdwg.mxu0
    %v2246 = vlaneseq
    %v2247 = vand.u32 %v2246, 127
    %vm2248 = vcmp.ge.s32.totalorder %v2247, 32
    %vm2249 = vcmp.lt.s32.totalorder %v2247, 39
    %vm2250 = vmand %vm2248, %vm2249
    %v2251 = vxor.u32 %v1313, 2147483648
    %v2252 = vxor.u32 %v1317, 2147483648
    %v2253 = vxor.u32 %v1323, 2147483648
    %v2254 = vxor.u32 %v1327, 2147483648
    %v2255 = vxor.u32 %v1333, 2147483648
    %v2256 = vxor.u32 %v1337, 2147483648
    %v2257 = vxor.u32 %v1343, 2147483648
    %v2258 = vxor.u32 %v1347, 2147483648
    %v2259 = vxor.u32 %v1353, 2147483648
    %v2260 = vxor.u32 %v1357, 2147483648
    %v2261 = vxor.u32 %v1363, 2147483648
    %v2262 = vxor.u32 %v1367, 2147483648
    %v2263 = vxor.u32 %v1373, 2147483648
    %v2264 = vxor.u32 %v1377, 2147483648
    %v2265 = vxor.u32 %v1383, 2147483648
    %v2266 = vxor.u32 %v1387, 2147483648
    %v2267 = vxor.u32 %v1393, 2147483648
    %v2268 = vxor.u32 %v1397, 2147483648
    %v2269 = vxor.u32 %v1403, 2147483648
    %v2270 = vxor.u32 %v1407, 2147483648
    %v2271 = vxor.u32 %v1413, 2147483648
    %v2272 = vxor.u32 %v1417, 2147483648
    %v2273 = vxor.u32 %v1423, 2147483648
    %v2274 = vxor.u32 %v1427, 2147483648
    %v2275 = vxor.u32 %v1433, 2147483648
    %v2276 = vxor.u32 %v1437, 2147483648
    %v2277 = vxor.u32 %v1443, 2147483648
    %v2278 = vxor.u32 %v1447, 2147483648
    %v2279 = vxor.u32 %v1453, 2147483648
    %v2280 = vxor.u32 %v1457, 2147483648
    %v2281 = vxor.u32 %v1463, 2147483648
    %v2282 = vxor.u32 %v1467, 2147483648
    %v2283 = vmul.f32 %v2251, 1.442695
    %v2284 = vpow.pop %v2283
    %v2285 = vmul.f32 %v2252, 1.442695
    %v2286 = vpow.pop %v2285
    %v2287 = vmul.f32 %v2253, 1.442695
    %v2288 = vpow.pop %v2287
    %v2289 = vmul.f32 %v2254, 1.442695
    %v2290 = vpow.pop %v2289
    %v2291 = vmul.f32 %v2255, 1.442695
    %v2292 = vpow.pop %v2291
    %v2293 = vmul.f32 %v2256, 1.442695
    %v2294 = vpow.pop %v2293
    %v2295 = vmul.f32 %v2257, 1.442695
    %v2296 = vpow.pop %v2295
    %v2297 = vmul.f32 %v2258, 1.442695
    %v2298 = vpow.pop %v2297
    %v2299 = vmul.f32 %v2259, 1.442695
    %v2300 = vpow.pop %v2299
    %v2301 = vmul.f32 %v2260, 1.442695
    %v2302 = vpow.pop %v2301
    %v2303 = vmul.f32 %v2261, 1.442695
    %v2304 = vpow.pop %v2303
    %v2305 = vmul.f32 %v2262, 1.442695
    %v2306 = vpow.pop %v2305
    %v2307 = vmul.f32 %v2263, 1.442695
    %v2308 = vpow.pop %v2307
    %v2309 = vmul.f32 %v2264, 1.442695
    %v2310 = vpow.pop %v2309
    %v2311 = vmul.f32 %v2265, 1.442695
    %v2312 = vpow.pop %v2311
    %v2313 = vmul.f32 %v2266, 1.442695
    %v2314 = vpow.pop %v2313
    %v2315 = vmul.f32 %v2267, 1.442695
    %v2316 = vpow.pop %v2315
    %v2317 = vmul.f32 %v2268, 1.442695
    %v2318 = vpow.pop %v2317
    %v2319 = vmul.f32 %v2269, 1.442695
    %v2320 = vpow.pop %v2319
    %v2321 = vmul.f32 %v2270, 1.442695
    %v2322 = vpow.pop %v2321
    %v2323 = vmul.f32 %v2271, 1.442695
    %v2324 = vpow.pop %v2323
    %v2325 = vmul.f32 %v2272, 1.442695
    %v2326 = vpow.pop %v2325
    %v2327 = vmul.f32 %v2273, 1.442695
    %v2328 = vpow.pop %v2327
    %v2329 = vmul.f32 %v2274, 1.442695
    %v2330 = vpow.pop %v2329
    %v2331 = vmul.f32 %v2275, 1.442695
    %v2332 = vpow.pop %v2331
    %v2333 = vmul.f32 %v2276, 1.442695
    %v2334 = vpow.pop %v2333
    %v2335 = vmul.f32 %v2277, 1.442695
    %v2336 = vpow.pop %v2335
    %v2337 = vmul.f32 %v2278, 1.442695
    %v2338 = vpow.pop %v2337
    %v2339 = vmul.f32 %v2279, 1.442695
    %v2340 = vpow.pop %v2339
    %v2341 = vmul.f32 %v2280, 1.442695
    %v2342 = vpow.pop %v2341
    %v2343 = vmul.f32 %v2281, 1.442695
    %v2344 = vpow.pop %v2343
    %v2345 = vmul.f32 %v2282, 1.442695
    %v2346 = vpow.pop %v2345
    %v2347 = vadd.f32 %v2284, 1.0
    %v2348 = vadd.f32 %v2286, 1.0
    %v2349 = vadd.f32 %v2288, 1.0
    %v2350 = vadd.f32 %v2290, 1.0
    %v2351 = vadd.f32 %v2292, 1.0
    %v2352 = vadd.f32 %v2294, 1.0
    %v2353 = vadd.f32 %v2296, 1.0
    %v2354 = vadd.f32 %v2298, 1.0
    %v2355 = vadd.f32 %v2300, 1.0
    %v2356 = vadd.f32 %v2302, 1.0
    %v2357 = vadd.f32 %v2304, 1.0
    %v2358 = vadd.f32 %v2306, 1.0
    %v2359 = vadd.f32 %v2308, 1.0
    %v2360 = vadd.f32 %v2310, 1.0
    %v2361 = vadd.f32 %v2312, 1.0
    %v2362 = vadd.f32 %v2314, 1.0
    %v2363 = vadd.f32 %v2316, 1.0
    %v2364 = vadd.f32 %v2318, 1.0
    %v2365 = vadd.f32 %v2320, 1.0
    %v2366 = vadd.f32 %v2322, 1.0
    %v2367 = vadd.f32 %v2324, 1.0
    %v2368 = vadd.f32 %v2326, 1.0
    %v2369 = vadd.f32 %v2328, 1.0
    %v2370 = vadd.f32 %v2330, 1.0
    %v2371 = vadd.f32 %v2332, 1.0
    %v2372 = vadd.f32 %v2334, 1.0
    %v2373 = vadd.f32 %v2336, 1.0
    %v2374 = vadd.f32 %v2338, 1.0
    %v2375 = vadd.f32 %v2340, 1.0
    %v2376 = vadd.f32 %v2342, 1.0
    %v2377 = vadd.f32 %v2344, 1.0
    %v2378 = vadd.f32 %v2346, 1.0
    %v2379 = vrcp.pop %v2347
    %v2380 = vmul.f32 1.0, %v2379
    %v2381 = vrcp.pop %v2348
    %v2382 = vmul.f32 1.0, %v2381
    %v2383 = vrcp.pop %v2349
    %v2384 = vmul.f32 1.0, %v2383
    %v2385 = vrcp.pop %v2350
    %v2386 = vmul.f32 1.0, %v2385
    %v2387 = vrcp.pop %v2351
    %v2388 = vmul.f32 1.0, %v2387
    %v2389 = vrcp.pop %v2352
    %v2390 = vmul.f32 1.0, %v2389
    %v2391 = vrcp.pop %v2353
    %v2392 = vmul.f32 1.0, %v2391
    %v2393 = vrcp.pop %v2354
    %v2394 = vmul.f32 1.0, %v2393
    %v2395 = vrcp.pop %v2355
    %v2396 = vmul.f32 1.0, %v2395
    %v2397 = vrcp.pop %v2356
    %v2398 = vmul.f32 1.0, %v2397
    %v2399 = vrcp.pop %v2357
    %v2400 = vmul.f32 1.0, %v2399
    %v2401 = vrcp.pop %v2358
    %v2402 = vmul.f32 1.0, %v2401
    %v2403 = vrcp.pop %v2359
    %v2404 = vmul.f32 1.0, %v2403
    %v2405 = vrcp.pop %v2360
    %v2406 = vmul.f32 1.0, %v2405
    %v2407 = vrcp.pop %v2361
    %v2408 = vmul.f32 1.0, %v2407
    %v2409 = vrcp.pop %v2362
    %v2410 = vmul.f32 1.0, %v2409
    %v2411 = vrcp.pop %v2363
    %v2412 = vmul.f32 1.0, %v2411
    %v2413 = vrcp.pop %v2364
    %v2414 = vmul.f32 1.0, %v2413
    %v2415 = vrcp.pop %v2365
    %v2416 = vmul.f32 1.0, %v2415
    %v2417 = vrcp.pop %v2366
    %v2418 = vmul.f32 1.0, %v2417
    %v2419 = vrcp.pop %v2367
    %v2420 = vmul.f32 1.0, %v2419
    %v2421 = vrcp.pop %v2368
    %v2422 = vmul.f32 1.0, %v2421
    %v2423 = vrcp.pop %v2369
    %v2424 = vmul.f32 1.0, %v2423
    %v2425 = vrcp.pop %v2370
    %v2426 = vmul.f32 1.0, %v2425
    %v2427 = vrcp.pop %v2371
    %v2428 = vmul.f32 1.0, %v2427
    %v2429 = vrcp.pop %v2372
    %v2430 = vmul.f32 1.0, %v2429
    %v2431 = vrcp.pop %v2373
    %v2432 = vmul.f32 1.0, %v2431
    %v2433 = vrcp.pop %v2374
    %v2434 = vmul.f32 1.0, %v2433
    %v2435 = vrcp.pop %v2375
    %v2436 = vmul.f32 1.0, %v2435
    %v2437 = vrcp.pop %v2376
    %v2438 = vmul.f32 1.0, %v2437
    %v2439 = vrcp.pop %v2377
    %v2440 = vmul.f32 1.0, %v2439
    %v2441 = vrcp.pop %v2378
    %v2442 = vmul.f32 1.0, %v2441
    %v2443 = vsel %vm2250, %v2380, 0.0
    %v2444 = vsel %vm2250, %v2382, 0.0
    %v2445 = vsel %vm2250, %v2384, 0.0
    %v2446 = vsel %vm2250, %v2386, 0.0
    %v2447 = vsel %vm2250, %v2388, 0.0
    %v2448 = vsel %vm2250, %v2390, 0.0
    %v2449 = vsel %vm2250, %v2392, 0.0
    %v2450 = vsel %vm2250, %v2394, 0.0
    %v2451 = vsel %vm2250, %v2396, 0.0
    %v2452 = vsel %vm2250, %v2398, 0.0
    %v2453 = vsel %vm2250, %v2400, 0.0
    %v2454 = vsel %vm2250, %v2402, 0.0
    %v2455 = vsel %vm2250, %v2404, 0.0
    %v2456 = vsel %vm2250, %v2406, 0.0
    %v2457 = vsel %vm2250, %v2408, 0.0
    %v2458 = vsel %vm2250, %v2410, 0.0
    %v2459 = vsel %vm2250, %v2412, 0.0
    %v2460 = vsel %vm2250, %v2414, 0.0
    %v2461 = vsel %vm2250, %v2416, 0.0
    %v2462 = vsel %vm2250, %v2418, 0.0
    %v2463 = vsel %vm2250, %v2420, 0.0
    %v2464 = vsel %vm2250, %v2422, 0.0
    %v2465 = vsel %vm2250, %v2424, 0.0
    %v2466 = vsel %vm2250, %v2426, 0.0
    %v2467 = vsel %vm2250, %v2428, 0.0
    %v2468 = vsel %vm2250, %v2430, 0.0
    %v2469 = vsel %vm2250, %v2432, 0.0
    %v2470 = vsel %vm2250, %v2434, 0.0
    %v2471 = vsel %vm2250, %v2436, 0.0
    %v2472 = vsel %vm2250, %v2438, 0.0
    %v2473 = vsel %vm2250, %v2440, 0.0
    %v2474 = vsel %vm2250, %v2442, 0.0
    %v2475 = vmul.f32 %v925, %v925
    %v2476 = vmul.f32 %v929, %v929
    %v2477 = vmul.f32 %v935, %v935
    %v2478 = vmul.f32 %v939, %v939
    %v2479 = vmul.f32 %v945, %v945
    %v2480 = vmul.f32 %v949, %v949
    %v2481 = vmul.f32 %v955, %v955
    %v2482 = vmul.f32 %v959, %v959
    %v2483 = vmul.f32 %v965, %v965
    %v2484 = vmul.f32 %v969, %v969
    %v2485 = vmul.f32 %v975, %v975
    %v2486 = vmul.f32 %v979, %v979
    %v2487 = vmul.f32 %v985, %v985
    %v2488 = vmul.f32 %v989, %v989
    %v2489 = vmul.f32 %v995, %v995
    %v2490 = vmul.f32 %v999, %v999
    %v2491 = vmul.f32 %v1005, %v1005
    %v2492 = vmul.f32 %v1009, %v1009
    %v2493 = vmul.f32 %v1015, %v1015
    %v2494 = vmul.f32 %v1019, %v1019
    %v2495 = vmul.f32 %v1025, %v1025
    %v2496 = vmul.f32 %v1029, %v1029
    %v2497 = vmul.f32 %v1035, %v1035
    %v2498 = vmul.f32 %v1039, %v1039
    %v2499 = vmul.f32 %v1045, %v1045
    %v2500 = vmul.f32 %v1049, %v1049
    %v2501 = vmul.f32 %v1055, %v1055
    %v2502 = vmul.f32 %v1059, %v1059
    %v2503 = vmul.f32 %v1065, %v1065
    %v2504 = vmul.f32 %v1069, %v1069
    %v2505 = vmul.f32 %v1075, %v1075
    %v2506 = vmul.f32 %v1079, %v1079
    %2507 = vadd.xlane.f32.xlu0 %v2475
    %v2508 = vpop.xlane.xlu0 %2507
    %2509 = vadd.xlane.f32.xlu0 %v2476
    %v2510 = vpop.xlane.xlu0 %2509
    %2511 = vadd.xlane.f32.xlu0 %v2477
    %v2512 = vpop.xlane.xlu0 %2511
    %2513 = vadd.xlane.f32.xlu0 %v2478
    %v2514 = vpop.xlane.xlu0 %2513
    %2515 = vadd.xlane.f32.xlu0 %v2479
    %v2516 = vpop.xlane.xlu0 %2515
    %2517 = vadd.xlane.f32.xlu0 %v2480
    %v2518 = vpop.xlane.xlu0 %2517
    %2519 = vadd.xlane.f32.xlu0 %v2481
    %v2520 = vpop.xlane.xlu0 %2519
    %2521 = vadd.xlane.f32.xlu0 %v2482
    %v2522 = vpop.xlane.xlu0 %2521
    %2523 = vadd.xlane.f32.xlu0 %v2483
    %v2524 = vpop.xlane.xlu0 %2523
    %2525 = vadd.xlane.f32.xlu0 %v2484
    %v2526 = vpop.xlane.xlu0 %2525
    %2527 = vadd.xlane.f32.xlu0 %v2485
    %v2528 = vpop.xlane.xlu0 %2527
    %2529 = vadd.xlane.f32.xlu0 %v2486
    %v2530 = vpop.xlane.xlu0 %2529
    %2531 = vadd.xlane.f32.xlu0 %v2487
    %v2532 = vpop.xlane.xlu0 %2531
    %2533 = vadd.xlane.f32.xlu0 %v2488
    %v2534 = vpop.xlane.xlu0 %2533
    %2535 = vadd.xlane.f32.xlu0 %v2489
    %v2536 = vpop.xlane.xlu0 %2535
    %2537 = vadd.xlane.f32.xlu0 %v2490
    %v2538 = vpop.xlane.xlu0 %2537
    %2539 = vadd.xlane.f32.xlu0 %v2491
    %v2540 = vpop.xlane.xlu0 %2539
    %2541 = vadd.xlane.f32.xlu0 %v2492
    %v2542 = vpop.xlane.xlu0 %2541
    %2543 = vadd.xlane.f32.xlu0 %v2493
    %v2544 = vpop.xlane.xlu0 %2543
    %2545 = vadd.xlane.f32.xlu0 %v2494
    %v2546 = vpop.xlane.xlu0 %2545
    %2547 = vadd.xlane.f32.xlu0 %v2495
    %v2548 = vpop.xlane.xlu0 %2547
    %2549 = vadd.xlane.f32.xlu0 %v2496
    %v2550 = vpop.xlane.xlu0 %2549
    %2551 = vadd.xlane.f32.xlu0 %v2497
    %v2552 = vpop.xlane.xlu0 %2551
    %2553 = vadd.xlane.f32.xlu0 %v2498
    %v2554 = vpop.xlane.xlu0 %2553
    %2555 = vadd.xlane.f32.xlu0 %v2499
    %v2556 = vpop.xlane.xlu0 %2555
    %2557 = vadd.xlane.f32.xlu0 %v2500
    %v2558 = vpop.xlane.xlu0 %2557
    %2559 = vadd.xlane.f32.xlu0 %v2501
    %v2560 = vpop.xlane.xlu0 %2559
    %2561 = vadd.xlane.f32.xlu0 %v2502
    %v2562 = vpop.xlane.xlu0 %2561
    %2563 = vadd.xlane.f32.xlu0 %v2503
    %v2564 = vpop.xlane.xlu0 %2563
    %2565 = vadd.xlane.f32.xlu0 %v2504
    %v2566 = vpop.xlane.xlu0 %2565
    %2567 = vadd.xlane.f32.xlu0 %v2505
    %v2568 = vpop.xlane.xlu0 %2567
    %2569 = vadd.xlane.f32.xlu0 %v2506
    %v2570 = vpop.xlane.xlu0 %2569
    %v2571 = vmax.f32 %v2508, 1e-24
    %v2572 = vmax.f32 %v2510, 1e-24
    %v2573 = vmax.f32 %v2512, 1e-24
    %v2574 = vmax.f32 %v2514, 1e-24
    %v2575 = vmax.f32 %v2516, 1e-24
    %v2576 = vmax.f32 %v2518, 1e-24
    %v2577 = vmax.f32 %v2520, 1e-24
    %v2578 = vmax.f32 %v2522, 1e-24
    %v2579 = vmax.f32 %v2524, 1e-24
    %v2580 = vmax.f32 %v2526, 1e-24
    %v2581 = vmax.f32 %v2528, 1e-24
    %v2582 = vmax.f32 %v2530, 1e-24
    %v2583 = vmax.f32 %v2532, 1e-24
    %v2584 = vmax.f32 %v2534, 1e-24
    %v2585 = vmax.f32 %v2536, 1e-24
    %v2586 = vmax.f32 %v2538, 1e-24
    %v2587 = vmax.f32 %v2540, 1e-24
    %v2588 = vmax.f32 %v2542, 1e-24
    %v2589 = vmax.f32 %v2544, 1e-24
    %v2590 = vmax.f32 %v2546, 1e-24
    %v2591 = vmax.f32 %v2548, 1e-24
    %v2592 = vmax.f32 %v2550, 1e-24
    %v2593 = vmax.f32 %v2552, 1e-24
    %v2594 = vmax.f32 %v2554, 1e-24
    %v2595 = vmax.f32 %v2556, 1e-24
    %v2596 = vmax.f32 %v2558, 1e-24
    %v2597 = vmax.f32 %v2560, 1e-24
    %v2598 = vmax.f32 %v2562, 1e-24
    %v2599 = vmax.f32 %v2564, 1e-24
    %v2600 = vmax.f32 %v2566, 1e-24
    %v2601 = vmax.f32 %v2568, 1e-24
    %v2602 = vmax.f32 %v2570, 1e-24
    %v2603 = vrsqrt.pop %v2571
    %v2604 = vrsqrt.pop %v2572
    %v2605 = vrsqrt.pop %v2573
    %v2606 = vrsqrt.pop %v2574
    %v2607 = vrsqrt.pop %v2575
    %v2608 = vrsqrt.pop %v2576
    %v2609 = vrsqrt.pop %v2577
    %v2610 = vrsqrt.pop %v2578
    %v2611 = vrsqrt.pop %v2579
    %v2612 = vrsqrt.pop %v2580
    %v2613 = vrsqrt.pop %v2581
    %v2614 = vrsqrt.pop %v2582
    %v2615 = vrsqrt.pop %v2583
    %v2616 = vrsqrt.pop %v2584
    %v2617 = vrsqrt.pop %v2585
    %v2618 = vrsqrt.pop %v2586
    %v2619 = vrsqrt.pop %v2587
    %v2620 = vrsqrt.pop %v2588
    %v2621 = vrsqrt.pop %v2589
    %v2622 = vrsqrt.pop %v2590
    %v2623 = vrsqrt.pop %v2591
    %v2624 = vrsqrt.pop %v2592
    %v2625 = vrsqrt.pop %v2593
    %v2626 = vrsqrt.pop %v2594
    %v2627 = vrsqrt.pop %v2595
    %v2628 = vrsqrt.pop %v2596
    %v2629 = vrsqrt.pop %v2597
    %v2630 = vrsqrt.pop %v2598
    %v2631 = vrsqrt.pop %v2599
    %v2632 = vrsqrt.pop %v2600
    %v2633 = vrsqrt.pop %v2601
    %v2634 = vrsqrt.pop %v2602
    %v2635 = vmul.f32 %v925, %v2603
    %v2636 = vmul.f32 %v929, %v2604
    %v2637 = vmul.f32 %v935, %v2605
    %v2638 = vmul.f32 %v939, %v2606
    %v2639 = vmul.f32 %v945, %v2607
    %v2640 = vmul.f32 %v949, %v2608
    %v2641 = vmul.f32 %v955, %v2609
    %v2642 = vmul.f32 %v959, %v2610
    %v2643 = vmul.f32 %v965, %v2611
    %v2644 = vmul.f32 %v969, %v2612
    %v2645 = vmul.f32 %v975, %v2613
    %v2646 = vmul.f32 %v979, %v2614
    %v2647 = vmul.f32 %v985, %v2615
    %v2648 = vmul.f32 %v989, %v2616
    %v2649 = vmul.f32 %v995, %v2617
    %v2650 = vmul.f32 %v999, %v2618
    %v2651 = vmul.f32 %v1005, %v2619
    %v2652 = vmul.f32 %v1009, %v2620
    %v2653 = vmul.f32 %v1015, %v2621
    %v2654 = vmul.f32 %v1019, %v2622
    %v2655 = vmul.f32 %v1025, %v2623
    %v2656 = vmul.f32 %v1029, %v2624
    %v2657 = vmul.f32 %v1035, %v2625
    %v2658 = vmul.f32 %v1039, %v2626
    %v2659 = vmul.f32 %v1045, %v2627
    %v2660 = vmul.f32 %v1049, %v2628
    %v2661 = vmul.f32 %v1055, %v2629
    %v2662 = vmul.f32 %v1059, %v2630
    %v2663 = vmul.f32 %v1065, %v2631
    %v2664 = vmul.f32 %v1069, %v2632
    %v2665 = vmul.f32 %v1075, %v2633
    %v2666 = vmul.f32 %v1079, %v2634
    %v2667 = vmul.f32 %v2120, %v2120
    %v2668 = vmul.f32 %v2123, %v2123
    %v2669 = vmul.f32 %v2128, %v2128
    %v2670 = vmul.f32 %v2131, %v2131
    %v2671 = vmul.f32 %v2136, %v2136
    %v2672 = vmul.f32 %v2139, %v2139
    %v2673 = vmul.f32 %v2144, %v2144
    %v2674 = vmul.f32 %v2147, %v2147
    %v2675 = vmul.f32 %v2152, %v2152
    %v2676 = vmul.f32 %v2155, %v2155
    %v2677 = vmul.f32 %v2160, %v2160
    %v2678 = vmul.f32 %v2163, %v2163
    %v2679 = vmul.f32 %v2168, %v2168
    %v2680 = vmul.f32 %v2171, %v2171
    %v2681 = vmul.f32 %v2176, %v2176
    %v2682 = vmul.f32 %v2179, %v2179
    %v2683 = vmul.f32 %v2184, %v2184
    %v2684 = vmul.f32 %v2187, %v2187
    %v2685 = vmul.f32 %v2192, %v2192
    %v2686 = vmul.f32 %v2195, %v2195
    %v2687 = vmul.f32 %v2200, %v2200
    %v2688 = vmul.f32 %v2203, %v2203
    %v2689 = vmul.f32 %v2208, %v2208
    %v2690 = vmul.f32 %v2211, %v2211
    %v2691 = vmul.f32 %v2216, %v2216
    %v2692 = vmul.f32 %v2219, %v2219
    %v2693 = vmul.f32 %v2224, %v2224
    %v2694 = vmul.f32 %v2227, %v2227
    %v2695 = vmul.f32 %v2232, %v2232
    %v2696 = vmul.f32 %v2235, %v2235
    %v2697 = vmul.f32 %v2240, %v2240
    %v2698 = vmul.f32 %v2243, %v2243
    %2699 = vadd.xlane.f32.xlu0 %v2667
    %v2700 = vpop.xlane.xlu0 %2699
    %2701 = vadd.xlane.f32.xlu0 %v2668
    %v2702 = vpop.xlane.xlu0 %2701
    %2703 = vadd.xlane.f32.xlu0 %v2669
    %v2704 = vpop.xlane.xlu0 %2703
    %2705 = vadd.xlane.f32.xlu0 %v2670
    %v2706 = vpop.xlane.xlu0 %2705
    %2707 = vadd.xlane.f32.xlu0 %v2671
    %v2708 = vpop.xlane.xlu0 %2707
    %2709 = vadd.xlane.f32.xlu0 %v2672
    %v2710 = vpop.xlane.xlu0 %2709
    %2711 = vadd.xlane.f32.xlu0 %v2673
    %v2712 = vpop.xlane.xlu0 %2711
    %2713 = vadd.xlane.f32.xlu0 %v2674
    %v2714 = vpop.xlane.xlu0 %2713
    %2715 = vadd.xlane.f32.xlu0 %v2675
    %v2716 = vpop.xlane.xlu0 %2715
    %2717 = vadd.xlane.f32.xlu0 %v2676
    %v2718 = vpop.xlane.xlu0 %2717
    %2719 = vadd.xlane.f32.xlu0 %v2677
    %v2720 = vpop.xlane.xlu0 %2719
    %2721 = vadd.xlane.f32.xlu0 %v2678
    %v2722 = vpop.xlane.xlu0 %2721
    %2723 = vadd.xlane.f32.xlu0 %v2679
    %v2724 = vpop.xlane.xlu0 %2723
    %2725 = vadd.xlane.f32.xlu0 %v2680
    %v2726 = vpop.xlane.xlu0 %2725
    %2727 = vadd.xlane.f32.xlu0 %v2681
    %v2728 = vpop.xlane.xlu0 %2727
    %2729 = vadd.xlane.f32.xlu0 %v2682
    %v2730 = vpop.xlane.xlu0 %2729
    %2731 = vadd.xlane.f32.xlu0 %v2683
    %v2732 = vpop.xlane.xlu0 %2731
    %2733 = vadd.xlane.f32.xlu0 %v2684
    %v2734 = vpop.xlane.xlu0 %2733
    %2735 = vadd.xlane.f32.xlu0 %v2685
    %v2736 = vpop.xlane.xlu0 %2735
    %2737 = vadd.xlane.f32.xlu0 %v2686
    %v2738 = vpop.xlane.xlu0 %2737
    %2739 = vadd.xlane.f32.xlu0 %v2687
    %v2740 = vpop.xlane.xlu0 %2739
    %2741 = vadd.xlane.f32.xlu0 %v2688
    %v2742 = vpop.xlane.xlu0 %2741
    %2743 = vadd.xlane.f32.xlu0 %v2689
    %v2744 = vpop.xlane.xlu0 %2743
    %2745 = vadd.xlane.f32.xlu0 %v2690
    %v2746 = vpop.xlane.xlu0 %2745
    %2747 = vadd.xlane.f32.xlu0 %v2691
    %v2748 = vpop.xlane.xlu0 %2747
    %2749 = vadd.xlane.f32.xlu0 %v2692
    %v2750 = vpop.xlane.xlu0 %2749
    %2751 = vadd.xlane.f32.xlu0 %v2693
    %v2752 = vpop.xlane.xlu0 %2751
    %2753 = vadd.xlane.f32.xlu0 %v2694
    %v2754 = vpop.xlane.xlu0 %2753
    %2755 = vadd.xlane.f32.xlu0 %v2695
    %v2756 = vpop.xlane.xlu0 %2755
    %2757 = vadd.xlane.f32.xlu0 %v2696
    %v2758 = vpop.xlane.xlu0 %2757
    %2759 = vadd.xlane.f32.xlu0 %v2697
    %v2760 = vpop.xlane.xlu0 %2759
    %2761 = vadd.xlane.f32.xlu0 %v2698
    %v2762 = vpop.xlane.xlu0 %2761
    %v2763 = vmax.f32 %v2700, 1e-24
    %v2764 = vmax.f32 %v2702, 1e-24
    %v2765 = vmax.f32 %v2704, 1e-24
    %v2766 = vmax.f32 %v2706, 1e-24
    %v2767 = vmax.f32 %v2708, 1e-24
    %v2768 = vmax.f32 %v2710, 1e-24
    %v2769 = vmax.f32 %v2712, 1e-24
    %v2770 = vmax.f32 %v2714, 1e-24
    %v2771 = vmax.f32 %v2716, 1e-24
    %v2772 = vmax.f32 %v2718, 1e-24
    %v2773 = vmax.f32 %v2720, 1e-24
    %v2774 = vmax.f32 %v2722, 1e-24
    %v2775 = vmax.f32 %v2724, 1e-24
    %v2776 = vmax.f32 %v2726, 1e-24
    %v2777 = vmax.f32 %v2728, 1e-24
    %v2778 = vmax.f32 %v2730, 1e-24
    %v2779 = vmax.f32 %v2732, 1e-24
    %v2780 = vmax.f32 %v2734, 1e-24
    %v2781 = vmax.f32 %v2736, 1e-24
    %v2782 = vmax.f32 %v2738, 1e-24
    %v2783 = vmax.f32 %v2740, 1e-24
    %v2784 = vmax.f32 %v2742, 1e-24
    %v2785 = vmax.f32 %v2744, 1e-24
    %v2786 = vmax.f32 %v2746, 1e-24
    %v2787 = vmax.f32 %v2748, 1e-24
    %v2788 = vmax.f32 %v2750, 1e-24
    %v2789 = vmax.f32 %v2752, 1e-24
    %v2790 = vmax.f32 %v2754, 1e-24
    %v2791 = vmax.f32 %v2756, 1e-24
    %v2792 = vmax.f32 %v2758, 1e-24
    %v2793 = vmax.f32 %v2760, 1e-24
    %v2794 = vmax.f32 %v2762, 1e-24
    %v2795 = vrsqrt.pop %v2763
    %v2796 = vrsqrt.pop %v2764
    %v2797 = vrsqrt.pop %v2765
    %v2798 = vrsqrt.pop %v2766
    %v2799 = vrsqrt.pop %v2767
    %v2800 = vrsqrt.pop %v2768
    %v2801 = vrsqrt.pop %v2769
    %v2802 = vrsqrt.pop %v2770
    %v2803 = vrsqrt.pop %v2771
    %v2804 = vrsqrt.pop %v2772
    %v2805 = vrsqrt.pop %v2773
    %v2806 = vrsqrt.pop %v2774
    %v2807 = vrsqrt.pop %v2775
    %v2808 = vrsqrt.pop %v2776
    %v2809 = vrsqrt.pop %v2777
    %v2810 = vrsqrt.pop %v2778
    %v2811 = vrsqrt.pop %v2779
    %v2812 = vrsqrt.pop %v2780
    %v2813 = vrsqrt.pop %v2781
    %v2814 = vrsqrt.pop %v2782
    %v2815 = vrsqrt.pop %v2783
    %v2816 = vrsqrt.pop %v2784
    %v2817 = vrsqrt.pop %v2785
    %v2818 = vrsqrt.pop %v2786
    %v2819 = vrsqrt.pop %v2787
    %v2820 = vrsqrt.pop %v2788
    %v2821 = vrsqrt.pop %v2789
    %v2822 = vrsqrt.pop %v2790
    %v2823 = vrsqrt.pop %v2791
    %v2824 = vrsqrt.pop %v2792
    %v2825 = vrsqrt.pop %v2793
    %v2826 = vrsqrt.pop %v2794
    %v2827 = vmul.f32 %v2120, %v2795
    %v2828 = vmul.f32 %v2123, %v2796
    %v2829 = vmul.f32 %v2128, %v2797
    %v2830 = vmul.f32 %v2131, %v2798
    %v2831 = vmul.f32 %v2136, %v2799
    %v2832 = vmul.f32 %v2139, %v2800
    %v2833 = vmul.f32 %v2144, %v2801
    %v2834 = vmul.f32 %v2147, %v2802
    %v2835 = vmul.f32 %v2152, %v2803
    %v2836 = vmul.f32 %v2155, %v2804
    %v2837 = vmul.f32 %v2160, %v2805
    %v2838 = vmul.f32 %v2163, %v2806
    %v2839 = vmul.f32 %v2168, %v2807
    %v2840 = vmul.f32 %v2171, %v2808
    %v2841 = vmul.f32 %v2176, %v2809
    %v2842 = vmul.f32 %v2179, %v2810
    %v2843 = vmul.f32 %v2184, %v2811
    %v2844 = vmul.f32 %v2187, %v2812
    %v2845 = vmul.f32 %v2192, %v2813
    %v2846 = vmul.f32 %v2195, %v2814
    %v2847 = vmul.f32 %v2200, %v2815
    %v2848 = vmul.f32 %v2203, %v2816
    %v2849 = vmul.f32 %v2208, %v2817
    %v2850 = vmul.f32 %v2211, %v2818
    %v2851 = vmul.f32 %v2216, %v2819
    %v2852 = vmul.f32 %v2219, %v2820
    %v2853 = vmul.f32 %v2224, %v2821
    %v2854 = vmul.f32 %v2227, %v2822
    %v2855 = vmul.f32 %v2232, %v2823
    %v2856 = vmul.f32 %v2235, %v2824
    %v2857 = vmul.f32 %v2240, %v2825
    %v2858 = vmul.f32 %v2243, %v2826
    %v2859 = vadd.f32 %v2635, %v2827
    %v2860 = vadd.f32 %v2636, %v2828
    %v2861 = vadd.f32 %v2637, %v2829
    %v2862 = vadd.f32 %v2638, %v2830
    %v2863 = vadd.f32 %v2639, %v2831
    %v2864 = vadd.f32 %v2640, %v2832
    %v2865 = vadd.f32 %v2641, %v2833
    %v2866 = vadd.f32 %v2642, %v2834
    %v2867 = vadd.f32 %v2643, %v2835
    %v2868 = vadd.f32 %v2644, %v2836
    %v2869 = vadd.f32 %v2645, %v2837
    %v2870 = vadd.f32 %v2646, %v2838
    %v2871 = vadd.f32 %v2647, %v2839
    %v2872 = vadd.f32 %v2648, %v2840
    %v2873 = vadd.f32 %v2649, %v2841
    %v2874 = vadd.f32 %v2650, %v2842
    %v2875 = vadd.f32 %v2651, %v2843
    %v2876 = vadd.f32 %v2652, %v2844
    %v2877 = vadd.f32 %v2653, %v2845
    %v2878 = vadd.f32 %v2654, %v2846
    %v2879 = vadd.f32 %v2655, %v2847
    %v2880 = vadd.f32 %v2656, %v2848
    %v2881 = vadd.f32 %v2657, %v2849
    %v2882 = vadd.f32 %v2658, %v2850
    %v2883 = vadd.f32 %v2659, %v2851
    %v2884 = vadd.f32 %v2660, %v2852
    %v2885 = vadd.f32 %v2661, %v2853
    %v2886 = vadd.f32 %v2662, %v2854
    %v2887 = vadd.f32 %v2663, %v2855
    %v2888 = vadd.f32 %v2664, %v2856
    %v2889 = vadd.f32 %v2665, %v2857
    %v2890 = vadd.f32 %v2666, %v2858
    %v2891 = vadd.f32 %v2859, %v2443
    %v2892 = vadd.f32 %v2860, %v2444
    %v2893 = vadd.f32 %v2861, %v2445
    %v2894 = vadd.f32 %v2862, %v2446
    %v2895 = vadd.f32 %v2863, %v2447
    %v2896 = vadd.f32 %v2864, %v2448
    %v2897 = vadd.f32 %v2865, %v2449
    %v2898 = vadd.f32 %v2866, %v2450
    %v2899 = vadd.f32 %v2867, %v2451
    %v2900 = vadd.f32 %v2868, %v2452
    %v2901 = vadd.f32 %v2869, %v2453
    %v2902 = vadd.f32 %v2870, %v2454
    %v2903 = vadd.f32 %v2871, %v2455
    %v2904 = vadd.f32 %v2872, %v2456
    %v2905 = vadd.f32 %v2873, %v2457
    %v2906 = vadd.f32 %v2874, %v2458
    %v2907 = vadd.f32 %v2875, %v2459
    %v2908 = vadd.f32 %v2876, %v2460
    %v2909 = vadd.f32 %v2877, %v2461
    %v2910 = vadd.f32 %v2878, %v2462
    %v2911 = vadd.f32 %v2879, %v2463
    %v2912 = vadd.f32 %v2880, %v2464
    %v2913 = vadd.f32 %v2881, %v2465
    %v2914 = vadd.f32 %v2882, %v2466
    %v2915 = vadd.f32 %v2883, %v2467
    %v2916 = vadd.f32 %v2884, %v2468
    %v2917 = vadd.f32 %v2885, %v2469
    %v2918 = vadd.f32 %v2886, %v2470
    %v2919 = vadd.f32 %v2887, %v2471
    %v2920 = vadd.f32 %v2888, %v2472
    %v2921 = vadd.f32 %v2889, %v2473
    %v2922 = vadd.f32 %v2890, %v2474
    %2923 = vst [vmem:[#allocation5] sm:$0xff] %v2891
    %2924 = vst [vmem:[#allocation5 + $0x8] sm:$0xff] %v2892
    %2925 = vst [vmem:[#allocation5 + $0x10] sm:$0xff] %v2893
    %2926 = vst [vmem:[#allocation5 + $0x18] sm:$0xff] %v2894
    %2927 = vst [vmem:[#allocation5 + $0x20] sm:$0xff] %v2895
    %2928 = vst [vmem:[#allocation5 + $0x28] sm:$0xff] %v2896
    %2929 = vst [vmem:[#allocation5 + $0x30] sm:$0xff] %v2897
    %2930 = vst [vmem:[#allocation5 + $0x38] sm:$0xff] %v2898
    %2931 = vst [vmem:[#allocation5 + $0x40] sm:$0xff] %v2899
    %2932 = vst [vmem:[#allocation5 + $0x48] sm:$0xff] %v2900
    %2933 = vst [vmem:[#allocation5 + $0x50] sm:$0xff] %v2901
    %2934 = vst [vmem:[#allocation5 + $0x58] sm:$0xff] %v2902
    %2935 = vst [vmem:[#allocation5 + $0x60] sm:$0xff] %v2903
    %2936 = vst [vmem:[#allocation5 + $0x68] sm:$0xff] %v2904
    %2937 = vst [vmem:[#allocation5 + $0x70] sm:$0xff] %v2905
    %2938 = vst [vmem:[#allocation5 + $0x78] sm:$0xff] %v2906
    %2939 = vst [vmem:[#allocation5 + $0x80] sm:$0xff] %v2907
    %2940 = vst [vmem:[#allocation5 + $0x88] sm:$0xff] %v2908
    %2941 = vst [vmem:[#allocation5 + $0x90] sm:$0xff] %v2909
    %2942 = vst [vmem:[#allocation5 + $0x98] sm:$0xff] %v2910
    %2943 = vst [vmem:[#allocation5 + $0xa0] sm:$0xff] %v2911
    %2944 = vst [vmem:[#allocation5 + $0xa8] sm:$0xff] %v2912
    %2945 = vst [vmem:[#allocation5 + $0xb0] sm:$0xff] %v2913
    %2946 = vst [vmem:[#allocation5 + $0xb8] sm:$0xff] %v2914
    %2947 = vst [vmem:[#allocation5 + $0xc0] sm:$0xff] %v2915
    %2948 = vst [vmem:[#allocation5 + $0xc8] sm:$0xff] %v2916
    %2949 = vst [vmem:[#allocation5 + $0xd0] sm:$0xff] %v2917
    %2950 = vst [vmem:[#allocation5 + $0xd8] sm:$0xff] %v2918
    %2951 = vst [vmem:[#allocation5 + $0xe0] sm:$0xff] %v2919
    %2952 = vst [vmem:[#allocation5 + $0xe8] sm:$0xff] %v2920
    %2953 = vst [vmem:[#allocation5 + $0xf0] sm:$0xff] %v2921
    %2954 = vst [vmem:[#allocation5 + $0xf8] sm:$0xff] %v2922
    // Predicated region
    $region42: #{tpu_custom_call.1} parent=1 // pred_check
      _
    $region43: #{tpu_custom_call.1} parent=1 // pred_check_branch
      %2956 = sbr.rel (0) target = $region45
    $region44: #{tpu_custom_call.1} parent=1 // pred_region
      %s2958 = ssub.s32 4096, 4096
      %2959 = vsyncadd [#allocation4], %s2958
      %s2960 = sshll.u32 [#allocation5], 4
      %s2961 = int_to_ptr.vmem [resolvable:$true] %s2960
      %2966 = dma.vmem_to_hbm [thread:$0]  %s2961, 4096, %s9, [#allocation4], 128, 128, 8
    $region45: #{tpu_custom_call.1} parent=1 // pred_fallthru
      _
    // Predicated region
    $region46: #{tpu_custom_call.1} parent=1 // pred_check
      _
    $region47: #{tpu_custom_call.1} parent=1 // pred_check_branch
      %2968 = sbr.rel (0) target = $region49
    $region48: #{tpu_custom_call.1} parent=1 // pred_region
      %2969 = dma.done [#allocation4], 4096
    $region49: #{tpu_custom_call.1} parent=1 // pred_fallthru
      _
    %2970 = vsyncpa [#allocation3], 1
    %2971 = vsyncpa [#allocation4], 1

</llo_original>
